<compile_context>
chip_gen: v5e
topology: v5e:2x2
jax: 0.10.0
libtpu: 0.0.40
codegen_flags: <defaults>
</compile_context>

<pallas_src>
import functools

import jax
import jax.numpy as jnp
from jax.experimental import pallas as pl
from jax.experimental.pallas import tpu as pltpu


# ------------------------- per-generation sizing ---------------------------

def _vmem_budget_bytes():
    """~3/4 of physical VMEM (96 MiB on v5e/v6e, 48 MiB on v7x); safe fallback."""
    try:
        info = pltpu.get_tpu_info()
        cap = int(getattr(info, "vmem_capacity_bytes", 0))
        if cap > 0:
            return int(min(cap * 3 // 4, 100 * 1024 * 1024))
    except Exception:
        pass
    return 48 * 1024 * 1024          # safe on every generation (v7x has 64 MiB)


VMEM_LIMIT_BYTES = _vmem_budget_bytes()
_BIG_VMEM = VMEM_LIMIT_BYTES >= 64 * 1024 * 1024   # True on v5e/v6e, False on v7x

TM_DEFAULT = 512 if _BIG_VMEM else 256   # row tile
TN_DEFAULT = 512 if _BIG_VMEM else 256   # matmul output tile (256-aligned)
TQ_DEFAULT = 256                         # flash attention q tile
TK_DEFAULT = 512 if _BIG_VMEM else 256   # flash attention kv tile
VOCAB_TILE = 512                         # lm_head vocab tile (wte padded to this)


def _pick_tile(dim, pref, aligns=(256, 128)):
    """Largest tile <= pref dividing dim, aligned to one of `aligns`;
    falls back to the full dim (full-dim blocks are always layout-legal)."""
    if dim <= pref:
        return dim
    for align in aligns:
        t = (pref // align) * align
        while t >= align:
            if dim % t == 0:
                return t
            t -= align
    return dim


# ------------- fused LN -> matmul -> bias -> [GELU] -> [residual] -----------

def _fused_linear_kernel(*refs, has_ln, activation, has_residual, res_scale, eps):
    it = iter(refs)
    x_ref = next(it)
    w_ref = next(it)
    b_ref = next(it)
    g_ref = next(it) if has_ln else None
    bln_ref = next(it) if has_ln else None
    r_ref = next(it) if has_residual else None
    o_ref = next(it)
    xn_ref = next(it) if has_ln else None      # (btm, K) bf16 LN cache

    if has_ln:
        # LayerNorm hoisted out of the N-tile loop: compute once per row tile.
        @pl.when(pl.program_id(1) == 0)
        def _ln():
            xf = x_ref[...].astype(jnp.float32)
            mu = jnp.mean(xf, axis=-1, keepdims=True)
            var = jnp.mean(jnp.square(xf - mu), axis=-1, keepdims=True)
            xf = (xf - mu) * jax.lax.rsqrt(var + eps)
            xf = xf * g_ref[...].astype(jnp.float32) + bln_ref[...].astype(jnp.float32)
            xn_ref[...] = xf.astype(jnp.bfloat16)
        x_mx = xn_ref[...]
    else:
        x_mx = x_ref[...]
        if x_mx.dtype != jnp.bfloat16:
            x_mx = x_mx.astype(jnp.bfloat16)

    w_mx = w_ref[...]
    if w_mx.dtype != jnp.bfloat16:
        w_mx = w_mx.astype(jnp.bfloat16)

    # full-K contraction: single MXU matmul per (i, j) tile, no accumulator.
    y = jnp.dot(x_mx, w_mx, preferred_element_type=jnp.float32)
    y = y + b_ref[...].astype(jnp.float32)
    if activation == "gelu":
        # exact (erf) GELU, matching torch.nn.functional.gelu default
        y = 0.5 * y * (1.0 + jax.lax.erf(y * (2.0 ** -0.5)))
    if has_residual:
        y = r_ref[...].astype(jnp.float32) + res_scale * y
    o_ref[...] = y.astype(o_ref.dtype)


def fused_linear(x, w, b, *, ln=None, activation=None, residual=None,
                 res_scale=1.0, out_dtype=jnp.float32, eps=1e-5,
                 tm=TM_DEFAULT, tn=TN_DEFAULT):
    """y = [res + res_scale*] act( LN?(x) @ w + b );  w stored (in, out)."""
    M, K = x.shape
    Kw, N = w.shape
    assert K == Kw
    has_ln = ln is not None
    has_res = residual is not None

    btm = _pick_tile(M, tm, aligns=(8,))
    btn = _pick_tile(N, tn)
    grid = (M // btm, N // btn)

    in_specs = [
        pl.BlockSpec((btm, K), lambda i, j: (i, 0)),     # x row tile (revisited)
        pl.BlockSpec((K, btn), lambda i, j: (0, j)),     # streaming weight tile
        pl.BlockSpec((1, btn), lambda i, j: (0, j)),     # bias
    ]
    inputs = [x, w, b.reshape(1, N)]
    if has_ln:
        g, bb = ln
        in_specs += [pl.BlockSpec((1, K), lambda i, j: (0, 0)),
                     pl.BlockSpec((1, K), lambda i, j: (0, 0))]
        inputs += [g.reshape(1, K), bb.reshape(1, K)]
    if has_res:
        in_specs.append(pl.BlockSpec((btm, btn), lambda i, j: (i, j)))
        inputs.append(residual)

    scratch = [pltpu.VMEM((btm, K), jnp.bfloat16)] if has_ln else []
    # The LN cache is carried across the j axis -> j must stay sequential.
    dims = ("parallel", "arbitrary") if has_ln else ("parallel", "parallel")

    kernel = functools.partial(
        _fused_linear_kernel, has_ln=has_ln, activation=activation,
        has_residual=has_res, res_scale=float(res_scale), eps=float(eps))

    return pl.pallas_call(
        kernel,
        out_shape=jax.ShapeDtypeStruct((M, N), out_dtype),
        grid=grid,
        in_specs=in_specs,
        out_specs=pl.BlockSpec((btm, btn), lambda i, j: (i, j)),
        scratch_shapes=scratch,
        compiler_params=pltpu.CompilerParams(
            dimension_semantics=dims,
            vmem_limit_bytes=VMEM_LIMIT_BYTES),
    )(*inputs)


# ------------------------ flash-style attention core ------------------------

def _flash_attn_kernel(q_ref, k_ref, v_ref, o_ref, m_sc, l_sc, acc_sc, *, scale):
    kv = pl.program_id(2)

    @pl.when(kv == 0)
    def _init():
        m_sc[...] = jnp.full(m_sc.shape, -jnp.inf, m_sc.dtype)
        l_sc[...] = jnp.zeros(l_sc.shape, l_sc.dtype)
        acc_sc[...] = jnp.zeros(acc_sc.shape, acc_sc.dtype)

    q = q_ref[0]                                        # (tq, hd) bf16
    k = k_ref[0]                                        # (tk, hd) bf16
    s = jax.lax.dot_general(q, k, (((1,), (1,)), ((), ())),
                            preferred_element_type=jnp.float32) * scale
    m_prev = m_sc[...]
    m_new = jnp.maximum(m_prev, jnp.max(s, axis=-1, keepdims=True))
    alpha = jnp.exp(m_prev - m_new)
    p = jnp.exp(s - m_new)
    l_sc[...] = alpha * l_sc[...] + jnp.sum(p, axis=-1, keepdims=True)
    acc_sc[...] = alpha * acc_sc[...] + jnp.dot(
        p.astype(jnp.bfloat16), v_ref[0], preferred_element_type=jnp.float32)
    m_sc[...] = m_new

    @pl.when(kv == pl.num_programs(2) - 1)
    def _finalize():
        o_ref[0] = (acc_sc[...] / l_sc[...]).astype(o_ref.dtype)


def flash_attention(q, k, v, *, scale, tq=TQ_DEFAULT, tk=TK_DEFAULT):
    """q,k,v: (B*H, S, hd) bf16 -> (B*H, S, hd) bf16. Non-causal attention."""
    BH, S, hd = q.shape
    btq = _pick_tile(S, tq, aligns=(128, 8))
    btk = _pick_tile(S, tk, aligns=(128, 8))
    grid = (BH, S // btq, S // btk)
    return pl.pallas_call(
        functools.partial(_flash_attn_kernel, scale=float(scale)),
        out_shape=jax.ShapeDtypeStruct((BH, S, hd), jnp.bfloat16),
        grid=grid,
        in_specs=[
            pl.BlockSpec((1, btq, hd), lambda b, qi, ki: (b, qi, 0)),
            pl.BlockSpec((1, btk, hd), lambda b, qi, ki: (b, ki, 0)),
            pl.BlockSpec((1, btk, hd), lambda b, qi, ki: (b, ki, 0)),
        ],
        out_specs=pl.BlockSpec((1, btq, hd), lambda b, qi, ki: (b, qi, 0)),
        scratch_shapes=[pltpu.VMEM((btq, 1), jnp.float32),
                        pltpu.VMEM((btq, 1), jnp.float32),
                        pltpu.VMEM((btq, hd), jnp.float32)],
        compiler_params=pltpu.CompilerParams(
            dimension_semantics=("parallel", "parallel", "arbitrary"),
            vmem_limit_bytes=VMEM_LIMIT_BYTES),
    )(q, k, v)


def attention(qkv, B, S, n_head, scale, *, tq=TQ_DEFAULT, tk=TK_DEFAULT):
    """qkv: (B*S, 3D) packed bf16 -> (B*S, D) bf16."""
    D3 = qkv.shape[-1]
    D = D3 // 3
    hd = D // n_head
    qkv = qkv.reshape(B, S, 3, n_head, hd)

    # Head split/merge in plain XLA (small relayouts vs. the matmuls).
    def _split(i):
        return jnp.transpose(qkv[:, :, i], (0, 2, 1, 3)).reshape(B * n_head, S, hd)

    q, k, v = _split(0), _split(1), _split(2)
    o = flash_attention(q, k, v, scale=scale, tq=tq, tk=tk)
    o = o.reshape(B, n_head, S, hd).transpose(0, 2, 1, 3).reshape(B * S, D)
    return o


# ----------------------- LN_f + tied-embedding lm_head ----------------------

def _lm_head_kernel(x_ref, g_ref, b_ref, w_ref, o_ref, h_ref, *, eps):
    @pl.when(pl.program_id(1) == 0)
    def _ln():
        # LayerNorm hoisted: computed once per row tile, reused for all vocab tiles.
        xf = x_ref[...].astype(jnp.float32)
        mu = jnp.mean(xf, axis=-1, keepdims=True)
        var = jnp.mean(jnp.square(xf - mu), axis=-1, keepdims=True)
        h = (xf - mu) * jax.lax.rsqrt(var + eps)
        h = h * g_ref[...] + b_ref[...]
        h_ref[...] = h.astype(jnp.bfloat16)

    w = w_ref[...]                                      # (btn, D) tile of wte
    if w.dtype != jnp.bfloat16:
        w = w.astype(jnp.bfloat16)
    o_ref[...] = jax.lax.dot_general(
        h_ref[...], w, (((1,), (1,)), ((), ())),
        preferred_element_type=jnp.float32)


def lm_head(x, wte_pad, g, b, n_vocab, *, eps=1e-5, tm=TM_DEFAULT, tn=VOCAB_TILE):
    """logits = LN_f(x) @ wte.T; wte already padded to a VOCAB_TILE multiple."""
    M, D = x.shape
    Vp = wte_pad.shape[0]
    btm = _pick_tile(M, tm, aligns=(8,))
    btn = _pick_tile(Vp, tn)
    grid = (M // btm, Vp // btn)
    out = pl.pallas_call(
        functools.partial(_lm_head_kernel, eps=float(eps)),
        out_shape=jax.ShapeDtypeStruct((M, Vp), jnp.float32),
        grid=grid,
        in_specs=[
            pl.BlockSpec((btm, D), lambda i, j: (i, 0)),
            pl.BlockSpec((1, D), lambda i, j: (0, 0)),
            pl.BlockSpec((1, D), lambda i, j: (0, 0)),
            pl.BlockSpec((btn, D), lambda i, j: (j, 0)),   # streaming wte tile
        ],
        out_specs=pl.BlockSpec((btm, btn), lambda i, j: (i, j)),
        scratch_shapes=[pltpu.VMEM((btm, D), jnp.bfloat16)],
        compiler_params=pltpu.CompilerParams(
            dimension_semantics=("parallel", "arbitrary"),
            vmem_limit_bytes=VMEM_LIMIT_BYTES),
    )(x, g.reshape(1, D), b.reshape(1, D), wte_pad)
    return out[:, :n_vocab] if Vp != n_vocab else out


# ------------------------------ model wrapper -------------------------------

def init_params(key, n_vocab, n_ctx, n_head, n_layer, n_embd):
    del n_head
    keys = jax.random.split(key, 4 + n_layer)
    d = n_embd
    wte = 0.02 * jax.random.normal(keys[0], (n_vocab, d), jnp.float32)
    vp = ((n_vocab + VOCAB_TILE - 1) // VOCAB_TILE) * VOCAB_TILE
    wte_pad = jnp.zeros((vp, d), jnp.bfloat16).at[:n_vocab].set(wte.astype(jnp.bfloat16))
    params = {
        "wte": wte,                      # f32 for embedding lookup
        "wte_pad_bf16": wte_pad,         # padded bf16 copy for tied lm_head MXU
        "wpe": 0.02 * jax.random.normal(keys[1], (n_ctx, d), jnp.float32),
        "lnf_g": 1.0 + 0.02 * jax.random.normal(keys[2], (d,), jnp.float32),
        "lnf_b": 0.02 * jax.random.normal(keys[3], (d,), jnp.float32),
        "blocks": [],
    }
    for l in range(n_layer):
        k = jax.random.split(keys[4 + l], 12)
        params["blocks"].append(dict(
            ln1_g=1.0 + 0.02 * jax.random.normal(k[0], (d,), jnp.float32),
            ln1_b=0.02 * jax.random.normal(k[1], (d,), jnp.float32),
            ln2_g=1.0 + 0.02 * jax.random.normal(k[2], (d,), jnp.float32),
            ln2_b=0.02 * jax.random.normal(k[3], (d,), jnp.float32),
            w_attn=(0.02 * jax.random.normal(k[4], (d, 3 * d))).astype(jnp.bfloat16),
            b_attn=0.02 * jax.random.normal(k[5], (3 * d,), jnp.float32),
            w_aproj=(0.02 * jax.random.normal(k[6], (d, d))).astype(jnp.bfloat16),
            b_aproj=0.02 * jax.random.normal(k[7], (d,), jnp.float32),
            w_fc=(0.02 * jax.random.normal(k[8], (d, 4 * d))).astype(jnp.bfloat16),
            b_fc=0.02 * jax.random.normal(k[9], (4 * d,), jnp.float32),
            w_proj=(0.02 * jax.random.normal(k[10], (4 * d, d))).astype(jnp.bfloat16),
            b_proj=0.02 * jax.random.normal(k[11], (d,), jnp.float32),
        ))
    return params


def gpt2_forward(params, tokens, n_head, dropout_attn=0.1, dropout_ff=0.1):
    B, S = tokens.shape
    V, D = params["wte"].shape
    scale = 1.0 / (float(D) ** 0.5)   # reference math scales by sqrt(n_embd)

    # embedding lookup + positional embedding (glue, plain JAX gather)
    x = jnp.take(params["wte"], tokens, axis=0) + params["wpe"][:S, :]
    x = x.reshape(B * S, D)           # residual stream kept in f32

    # TODO(synk): training-mode stochastic sublayer skipping (random.random())
    # and dropout RNG are non-deterministic training-only behavior; the
    # deterministic inference_mode path is implemented instead.
    for blk in params["blocks"]:
        # attention sublayer: LN1 fused into QKV, residual+(1-p) fused into proj
        qkv = fused_linear(x, blk["w_attn"], blk["b_attn"],
                           ln=(blk["ln1_g"], blk["ln1_b"]),
                           out_dtype=jnp.bfloat16)                    # (B*S, 3D)
        attn_out = attention(qkv, B, S, n_head, scale)                # (B*S, D)
        x = fused_linear(attn_out, blk["w_aproj"], blk["b_aproj"],
                         residual=x, res_scale=1.0 - dropout_attn,
                         out_dtype=jnp.float32)

        # MLP sublayer: LN2+GELU fused into FC, residual+(1-p) fused into proj
        ff = fused_linear(x, blk["w_fc"], blk["b_fc"],
                          ln=(blk["ln2_g"], blk["ln2_b"]),
                          activation="gelu", out_dtype=jnp.bfloat16)
        x = fused_linear(ff, blk["w_proj"], blk["b_proj"],
                         residual=x, res_scale=1.0 - dropout_ff,
                         out_dtype=jnp.float32)

    # final LN fused into the tied-embedding logits matmul (no transpose, no pad copy)
    logits = lm_head(x, params["wte_pad_bf16"], params["lnf_g"], params["lnf_b"], V)
    return logits.reshape(B, S, V)


# --------------------------------- main -------------------------------------

if __name__ == "__main__":
    n_vocab, n_ctx, n_head, n_layer, n_embd = 128, 16, 4, 2, 64
    batch, seqlen = 2, 8

    key = jax.random.PRNGKey(0)
    pkey, tkey = jax.random.split(key)
    params = init_params(pkey, n_vocab, n_ctx, n_head, n_layer, n_embd)
    tokens = jax.random.randint(tkey, (batch, seqlen), 0, n_vocab, jnp.int32)

    fwd = jax.jit(functools.partial(gpt2_forward, n_head=n_head))
    out = jax.block_until_ready(fwd(params, tokens))
    assert out.shape == (batch, seqlen, n_vocab)
    assert out.dtype == jnp.float32
    assert bool(jnp.all(jnp.isfinite(out)))
    print("KERNEL_OK")
</pallas_src>

<mosaic_0001>
module attributes {stable_mosaic.version = 11 : i64} {
  func.func @_fused_linear_kernel(%arg0: i32, %arg1: i32, %arg2: memref<16x64xf32, #tpu.memory_space<vmem>>, %arg3: memref<64x192xbf16, #tpu.memory_space<vmem>>, %arg4: memref<1x192xf32, #tpu.memory_space<vmem>>, %arg5: memref<1x64xf32, #tpu.memory_space<vmem>>, %arg6: memref<1x64xf32, #tpu.memory_space<vmem>>, %arg7: memref<16x192xbf16, #tpu.memory_space<vmem>>, %arg8: memref<16x64xbf16, #tpu.memory_space<vmem>>) attributes {dimension_semantics = [#tpu.dimension_semantics<parallel>, #tpu.dimension_semantics<arbitrary>], iteration_bounds = array<i64: 1, 1>, scalar_prefetch = 0 : i64, scratch_operands = 1 : i64, tpu.core_type = #tpu.core_type<tc>, window_params = [{transform_indices = @transform_0, window_bounds = array<i64: 16, 64>}, {transform_indices = @transform_1, window_bounds = array<i64: 64, 192>}, {transform_indices = @transform_2, window_bounds = array<i64: 1, 192>}, {pipeline_mode = #tpu.pipeline_mode<synchronous>, transform_indices = @transform_3, window_bounds = array<i64: 1, 64>}, {pipeline_mode = #tpu.pipeline_mode<synchronous>, transform_indices = @transform_4, window_bounds = array<i64: 1, 64>}, {transform_indices = @transform_5, window_bounds = array<i64: 16, 192>}]} {
    %c0_i32 = arith.constant 0 : i32
    %0 = arith.cmpi eq, %arg1, %c0_i32 : i32
    %1 = arith.extui %0 : i1 to i32
    %c0_i32_0 = arith.constant 0 : i32
    %2 = arith.cmpi ne, %1, %c0_i32_0 : i32
    scf.if %2 {
      %c0_8 = arith.constant 0 : index
      %c0_9 = arith.constant 0 : index
      %11 = vector.load %arg2[%c0_8, %c0_9] : memref<16x64xf32, #tpu.memory_space<vmem>>, vector<16x64xf32>
      %cst_10 = arith.constant dense<0.000000e+00> : vector<16xf32>
      %12 = vector.multi_reduction <add>, %11, %cst_10 [1] : vector<16x64xf32> to vector<16xf32>
      %13 = vector.shape_cast %12 : vector<16xf32> to vector<16x1xf32>
      %cst_11 = arith.constant 6.400000e+01 : f32
      %14 = vector.broadcast %cst_11 : f32 to vector<16x1xf32>
      %15 = arith.divf %13, %14 : vector<16x1xf32>
      %16 = vector.broadcast %15 : vector<16x1xf32> to vector<16x64xf32>
      %17 = arith.subf %11, %16 : vector<16x64xf32>
      %18 = arith.mulf %17, %17 : vector<16x64xf32>
      %cst_12 = arith.constant dense<0.000000e+00> : vector<16xf32>
      %19 = vector.multi_reduction <add>, %18, %cst_12 [1] : vector<16x64xf32> to vector<16xf32>
      %20 = vector.shape_cast %19 : vector<16xf32> to vector<16x1xf32>
      %cst_13 = arith.constant 6.400000e+01 : f32
      %21 = vector.broadcast %cst_13 : f32 to vector<16x1xf32>
      %22 = arith.divf %20, %21 : vector<16x1xf32>
      %23 = vector.broadcast %15 : vector<16x1xf32> to vector<16x64xf32>
      %24 = arith.subf %11, %23 : vector<16x64xf32>
      %cst_14 = arith.constant 9.99999974E-6 : f32
      %25 = vector.broadcast %cst_14 : f32 to vector<16x1xf32>
      %26 = arith.addf %22, %25 : vector<16x1xf32>
      %27 = math.rsqrt %26 : vector<16x1xf32>
      %28 = vector.broadcast %27 : vector<16x1xf32> to vector<16x64xf32>
      %29 = arith.mulf %24, %28 : vector<16x64xf32>
      %c0_15 = arith.constant 0 : index
      %c0_16 = arith.constant 0 : index
      %30 = vector.load %arg5[%c0_15, %c0_16] : memref<1x64xf32, #tpu.memory_space<vmem>>, vector<1x64xf32>
      %31 = vector.broadcast %30 : vector<1x64xf32> to vector<16x64xf32>
      %32 = arith.mulf %29, %31 : vector<16x64xf32>
      %c0_17 = arith.constant 0 : index
      %c0_18 = arith.constant 0 : index
      %33 = vector.load %arg6[%c0_17, %c0_18] : memref<1x64xf32, #tpu.memory_space<vmem>>, vector<1x64xf32>
      %34 = vector.broadcast %33 : vector<1x64xf32> to vector<16x64xf32>
      %35 = arith.addf %32, %34 : vector<16x64xf32>
      %36 = arith.truncf %35 : vector<16x64xf32> to vector<16x64xbf16>
      %c0_19 = arith.constant 0 : index
      %c0_20 = arith.constant 0 : index
      %37 = vector.load %arg8[%c0_19, %c0_20] : memref<16x64xbf16, #tpu.memory_space<vmem>>, vector<16x64xbf16>
      tpu.vector_store %arg8[%c0_19, %c0_20], %36 {strides = array<i32>} : memref<16x64xbf16, #tpu.memory_space<vmem>>, vector<16x64xbf16>,
    } else {
    }
    %c0 = arith.constant 0 : index
    %c0_1 = arith.constant 0 : index
    %3 = vector.load %arg8[%c0, %c0_1] : memref<16x64xbf16, #tpu.memory_space<vmem>>, vector<16x64xbf16>
    %c0_2 = arith.constant 0 : index
    %c0_3 = arith.constant 0 : index
    %4 = vector.load %arg3[%c0_2, %c0_3] : memref<64x192xbf16, #tpu.memory_space<vmem>>, vector<64x192xbf16>
    %cst = arith.constant dense<0.000000e+00> : vector<16x192xf32>
    %5 = tpu.matmul %3, %4, %cst {dimension_numbers = #tpu.dot_dimension_numbers<[1], [0], [0], [1], [0, 0, 1, 1], [], []>} : vector<16x64xbf16>, vector<64x192xbf16>, vector<16x192xf32> -> vector<16x192xf32>
    %c0_4 = arith.constant 0 : index
    %c0_5 = arith.constant 0 : index
    %6 = vector.load %arg4[%c0_4, %c0_5] : memref<1x192xf32, #tpu.memory_space<vmem>>, vector<1x192xf32>
    %7 = vector.broadcast %6 : vector<1x192xf32> to vector<16x192xf32>
    %8 = arith.addf %5, %7 : vector<16x192xf32>
    %9 = arith.truncf %8 : vector<16x192xf32> to vector<16x192xbf16>
    %c0_6 = arith.constant 0 : index
    %c0_7 = arith.constant 0 : index
    %10 = vector.load %arg7[%c0_6, %c0_7] : memref<16x192xbf16, #tpu.memory_space<vmem>>, vector<16x192xbf16>
    tpu.vector_store %arg7[%c0_6, %c0_7], %9 {strides = array<i32>} : memref<16x192xbf16, #tpu.memory_space<vmem>>, vector<16x192xbf16>,
    return
  }
  func.func @transform_0(%arg0: i32, %arg1: i32) -> (i32, i32) {
    %c0_i32 = arith.constant 0 : i32
    %c0_i32_0 = arith.constant 0 : i32
    return %arg0, %c0_i32 : i32, i32
  }
  func.func @transform_1(%arg0: i32, %arg1: i32) -> (i32, i32) {
    %c0_i32 = arith.constant 0 : i32
    %c0_i32_0 = arith.constant 0 : i32
    return %c0_i32, %arg1 : i32, i32
  }
  func.func @transform_2(%arg0: i32, %arg1: i32) -> (i32, i32) {
    %c0_i32 = arith.constant 0 : i32
    %c0_i32_0 = arith.constant 0 : i32
    return %c0_i32, %arg1 : i32, i32
  }
  func.func @transform_3(%arg0: i32, %arg1: i32) -> (i32, i32) {
    %c0_i32 = arith.constant 0 : i32
    %c0_i32_0 = arith.constant 0 : i32
    %c0_i32_1 = arith.constant 0 : i32
    return %c0_i32, %c0_i32_0 : i32, i32
  }
  func.func @transform_4(%arg0: i32, %arg1: i32) -> (i32, i32) {
    %c0_i32 = arith.constant 0 : i32
    %c0_i32_0 = arith.constant 0 : i32
    %c0_i32_1 = arith.constant 0 : i32
    return %c0_i32, %c0_i32_0 : i32, i32
  }
  func.func @transform_5(%arg0: i32, %arg1: i32) -> (i32, i32) {
    %c0_i32 = arith.constant 0 : i32
    return %arg0, %arg1 : i32, i32
  }
}

module attributes {stable_mosaic.version = 11 : i64} {
  func.func @_flash_attn_kernel(%arg0: i32, %arg1: i32, %arg2: i32, %arg3: memref<1x8x16xbf16, #tpu.memory_space<vmem>>, %arg4: memref<1x8x16xbf16, #tpu.memory_space<vmem>>, %arg5: memref<1x8x16xbf16, #tpu.memory_space<vmem>>, %arg6: memref<1x8x16xbf16, #tpu.memory_space<vmem>>, %arg7: memref<8x1xf32, #tpu.memory_space<vmem>>, %arg8: memref<8x1xf32, #tpu.memory_space<vmem>>, %arg9: memref<8x16xf32, #tpu.memory_space<vmem>>) attributes {dimension_semantics = [#tpu.dimension_semantics<parallel>, #tpu.dimension_semantics<parallel>, #tpu.dimension_semantics<arbitrary>], iteration_bounds = array<i64: 8, 1, 1>, scalar_prefetch = 0 : i64, scratch_operands = 3 : i64, tpu.core_type = #tpu.core_type<tc>, window_params = [{transform_indices = @transform_0, window_bounds = array<i64: 1, 8, 16>}, {transform_indices = @transform_1, window_bounds = array<i64: 1, 8, 16>}, {transform_indices = @transform_2, window_bounds = array<i64: 1, 8, 16>}, {transform_indices = @transform_3, window_bounds = array<i64: 1, 8, 16>}]} {
    %c0_i32 = arith.constant 0 : i32
    %0 = arith.cmpi eq, %arg2, %c0_i32 : i32
    %1 = arith.extui %0 : i1 to i32
    %c0_i32_0 = arith.constant 0 : i32
    %2 = arith.cmpi ne, %1, %c0_i32_0 : i32
    scf.if %2 {
      %cst_27 = arith.constant 0xFF800000 : f32
      %38 = vector.broadcast %cst_27 : f32 to vector<8x1xf32>
      %c0_28 = arith.constant 0 : index
      %c0_29 = arith.constant 0 : index
      %39 = vector.load %arg7[%c0_28, %c0_29] : memref<8x1xf32, #tpu.memory_space<vmem>>, vector<8x1xf32>
      tpu.vector_store %arg7[%c0_28, %c0_29], %38 {strides = array<i32>} : memref<8x1xf32, #tpu.memory_space<vmem>>, vector<8x1xf32>,
      %cst_30 = arith.constant 0.000000e+00 : f32
      %40 = vector.broadcast %cst_30 : f32 to vector<8x1xf32>
      %c0_31 = arith.constant 0 : index
      %c0_32 = arith.constant 0 : index
      %41 = vector.load %arg8[%c0_31, %c0_32] : memref<8x1xf32, #tpu.memory_space<vmem>>, vector<8x1xf32>
      tpu.vector_store %arg8[%c0_31, %c0_32], %40 {strides = array<i32>} : memref<8x1xf32, #tpu.memory_space<vmem>>, vector<8x1xf32>,
      %cst_33 = arith.constant 0.000000e+00 : f32
      %42 = vector.broadcast %cst_33 : f32 to vector<8x16xf32>
      %c0_34 = arith.constant 0 : index
      %c0_35 = arith.constant 0 : index
      %43 = vector.load %arg9[%c0_34, %c0_35] : memref<8x16xf32, #tpu.memory_space<vmem>>, vector<8x16xf32>
      tpu.vector_store %arg9[%c0_34, %c0_35], %42 {strides = array<i32>} : memref<8x16xf32, #tpu.memory_space<vmem>>, vector<8x16xf32>,
    } else {
    }
    %c0 = arith.constant 0 : index
    %c0_1 = arith.constant 0 : index
    %c0_2 = arith.constant 0 : index
    %3 = vector.load %arg3[%c0, %c0_1, %c0_2] : memref<1x8x16xbf16, #tpu.memory_space<vmem>>, vector<1x8x16xbf16>
    %4 = vector.shape_cast %3 : vector<1x8x16xbf16> to vector<8x16xbf16>
    %c0_3 = arith.constant 0 : index
    %c0_4 = arith.constant 0 : index
    %c0_5 = arith.constant 0 : index
    %5 = vector.load %arg4[%c0_3, %c0_4, %c0_5] : memref<1x8x16xbf16, #tpu.memory_space<vmem>>, vector<1x8x16xbf16>
    %6 = vector.shape_cast %5 : vector<1x8x16xbf16> to vector<8x16xbf16>
    %cst = arith.constant dense<0.000000e+00> : vector<8x8xf32>
    %7 = tpu.matmul %4, %6, %cst {dimension_numbers = #tpu.dot_dimension_numbers<[1], [1], [0], [0], [0, 0, 1, 0], [], []>} : vector<8x16xbf16>, vector<8x16xbf16>, vector<8x8xf32> -> vector<8x8xf32>
    %cst_6 = arith.constant 1.250000e-01 : f32
    %8 = vector.broadcast %cst_6 : f32 to vector<8x8xf32>
    %9 = arith.mulf %7, %8 : vector<8x8xf32>
    %c0_7 = arith.constant 0 : index
    %c0_8 = arith.constant 0 : index
    %10 = vector.load %arg7[%c0_7, %c0_8] : memref<8x1xf32, #tpu.memory_space<vmem>>, vector<8x1xf32>
    %cst_9 = arith.constant dense<0xFF800000> : vector<8xf32>
    %11 = vector.multi_reduction <maximumf>, %9, %cst_9 [1] : vector<8x8xf32> to vector<8xf32>
    %12 = vector.shape_cast %11 : vector<8xf32> to vector<8x1xf32>
    %13 = arith.maximumf %10, %12 : vector<8x1xf32>
    %14 = arith.subf %10, %13 : vector<8x1xf32>
    %15 = math.exp %14 : vector<8x1xf32>
    %16 = vector.broadcast %13 : vector<8x1xf32> to vector<8x8xf32>
    %17 = arith.subf %9, %16 : vector<8x8xf32>
    %18 = math.exp %17 : vector<8x8xf32>
    %c0_10 = arith.constant 0 : index
    %c0_11 = arith.constant 0 : index
    %19 = vector.load %arg8[%c0_10, %c0_11] : memref<8x1xf32, #tpu.memory_space<vmem>>, vector<8x1xf32>
    %20 = arith.mulf %15, %19 : vector<8x1xf32>
    %cst_12 = arith.constant dense<0.000000e+00> : vector<8xf32>
    %21 = vector.multi_reduction <add>, %18, %cst_12 [1] : vector<8x8xf32> to vector<8xf32>
    %22 = vector.shape_cast %21 : vector<8xf32> to vector<8x1xf32>
    %23 = arith.addf %20, %22 : vector<8x1xf32>
    %c0_13 = arith.constant 0 : index
    %c0_14 = arith.constant 0 : index
    %24 = vector.load %arg8[%c0_13, %c0_14] : memref<8x1xf32, #tpu.memory_space<vmem>>, vector<8x1xf32>
    tpu.vector_store %arg8[%c0_13, %c0_14], %23 {strides = array<i32>} : memref<8x1xf32, #tpu.memory_space<vmem>>, vector<8x1xf32>,
    %c0_15 = arith.constant 0 : index
    %c0_16 = arith.constant 0 : index
    %25 = vector.load %arg9[%c0_15, %c0_16] : memref<8x16xf32, #tpu.memory_space<vmem>>, vector<8x16xf32>
    %26 = vector.broadcast %15 : vector<8x1xf32> to vector<8x16xf32>
    %27 = arith.mulf %26, %25 : vector<8x16xf32>
    %28 = arith.truncf %18 : vector<8x8xf32> to vector<8x8xbf16>
    %c0_17 = arith.constant 0 : index
    %c0_18 = arith.constant 0 : index
    %c0_19 = arith.constant 0 : index
    %29 = vector.load %arg5[%c0_17, %c0_18, %c0_19] : memref<1x8x16xbf16, #tpu.memory_space<vmem>>, vector<1x8x16xbf16>
    %30 = vector.shape_cast %29 : vector<1x8x16xbf16> to vector<8x16xbf16>
    %cst_20 = arith.constant dense<0.000000e+00> : vector<8x16xf32>
    %31 = tpu.matmul %28, %30, %cst_20 {dimension_numbers = #tpu.dot_dimension_numbers<[1], [0], [0], [1], [0, 0, 1, 1], [], []>} : vector<8x8xbf16>, vector<8x16xbf16>, vector<8x16xf32> -> vector<8x16xf32>
    %32 = arith.addf %27, %31 : vector<8x16xf32>
    %c0_21 = arith.constant 0 : index
    %c0_22 = arith.constant 0 : index
    %33 = vector.load %arg9[%c0_21, %c0_22] : memref<8x16xf32, #tpu.memory_space<vmem>>, vector<8x16xf32>
    tpu.vector_store %arg9[%c0_21, %c0_22], %32 {strides = array<i32>} : memref<8x16xf32, #tpu.memory_space<vmem>>, vector<8x16xf32>,
    %c0_23 = arith.constant 0 : index
    %c0_24 = arith.constant 0 : index
    %34 = vector.load %arg7[%c0_23, %c0_24] : memref<8x1xf32, #tpu.memory_space<vmem>>, vector<8x1xf32>
    tpu.vector_store %arg7[%c0_23, %c0_24], %13 {strides = array<i32>} : memref<8x1xf32, #tpu.memory_space<vmem>>, vector<8x1xf32>,
    %c0_i32_25 = arith.constant 0 : i32
    %35 = arith.cmpi eq, %arg2, %c0_i32_25 : i32
    %36 = arith.extui %35 : i1 to i32
    %c0_i32_26 = arith.constant 0 : i32
    %37 = arith.cmpi ne, %36, %c0_i32_26 : i32
    scf.if %37 {
      %c0_27 = arith.constant 0 : index
      %c0_28 = arith.constant 0 : index
      %38 = vector.load %arg9[%c0_27, %c0_28] : memref<8x16xf32, #tpu.memory_space<vmem>>, vector<8x16xf32>
      %c0_29 = arith.constant 0 : index
      %c0_30 = arith.constant 0 : index
      %39 = vector.load %arg8[%c0_29, %c0_30] : memref<8x1xf32, #tpu.memory_space<vmem>>, vector<8x1xf32>
      %40 = vector.broadcast %39 : vector<8x1xf32> to vector<8x16xf32>
      %41 = arith.divf %38, %40 : vector<8x16xf32>
      %42 = arith.truncf %41 : vector<8x16xf32> to vector<8x16xbf16>
      %c0_31 = arith.constant 0 : index
      %c0_32 = arith.constant 0 : index
      %c0_33 = arith.constant 0 : index
      %43 = vector.load %arg6[%c0_31, %c0_32, %c0_33] : memref<1x8x16xbf16, #tpu.memory_space<vmem>>, vector<1x8x16xbf16>
      %44 = vector.shape_cast %43 : vector<1x8x16xbf16> to vector<8x16xbf16>
      %45 = vector.shape_cast %42 : vector<8x16xbf16> to vector<1x8x16xbf16>
      tpu.vector_store %arg6[%c0_31, %c0_32, %c0_33], %45 {strides = array<i32>} : memref<1x8x16xbf16, #tpu.memory_space<vmem>>, vector<1x8x16xbf16>,
    } else {
    }
    return
  }
  func.func @transform_0(%arg0: i32, %arg1: i32, %arg2: i32) -> (i32, i32, i32) {
    %c0_i32 = arith.constant 0 : i32
    %c0_i32_0 = arith.constant 0 : i32
    return %arg0, %arg1, %c0_i32 : i32, i32, i32
  }
  func.func @transform_1(%arg0: i32, %arg1: i32, %arg2: i32) -> (i32, i32, i32) {
    %c0_i32 = arith.constant 0 : i32
    %c0_i32_0 = arith.constant 0 : i32
    return %arg0, %arg2, %c0_i32 : i32, i32, i32
  }
  func.func @transform_2(%arg0: i32, %arg1: i32, %arg2: i32) -> (i32, i32, i32) {
    %c0_i32 = arith.constant 0 : i32
    %c0_i32_0 = arith.constant 0 : i32
    return %arg0, %arg2, %c0_i32 : i32, i32, i32
  }
  func.func @transform_3(%arg0: i32, %arg1: i32, %arg2: i32) -> (i32, i32, i32) {
    %c0_i32 = arith.constant 0 : i32
    %c0_i32_0 = arith.constant 0 : i32
    return %arg0, %arg1, %c0_i32 : i32, i32, i32
  }
}

module attributes {stable_mosaic.version = 11 : i64} {
  func.func @_fused_linear_kernel(%arg0: i32, %arg1: i32, %arg2: memref<16x64xbf16, #tpu.memory_space<vmem>>, %arg3: memref<64x64xbf16, #tpu.memory_space<vmem>>, %arg4: memref<1x64xf32, #tpu.memory_space<vmem>>, %arg5: memref<16x64xf32, #tpu.memory_space<vmem>>, %arg6: memref<16x64xf32, #tpu.memory_space<vmem>>) attributes {dimension_semantics = [#tpu.dimension_semantics<parallel>, #tpu.dimension_semantics<parallel>], iteration_bounds = array<i64: 1, 1>, scalar_prefetch = 0 : i64, scratch_operands = 0 : i64, tpu.core_type = #tpu.core_type<tc>, window_params = [{transform_indices = @transform_0, window_bounds = array<i64: 16, 64>}, {transform_indices = @transform_1, window_bounds = array<i64: 64, 64>}, {transform_indices = @transform_2, window_bounds = array<i64: 1, 64>}, {transform_indices = @transform_3, window_bounds = array<i64: 16, 64>}, {transform_indices = @transform_4, window_bounds = array<i64: 16, 64>}]} {
    %c0 = arith.constant 0 : index
    %c0_0 = arith.constant 0 : index
    %0 = vector.load %arg2[%c0, %c0_0] : memref<16x64xbf16, #tpu.memory_space<vmem>>, vector<16x64xbf16>
    %c0_1 = arith.constant 0 : index
    %c0_2 = arith.constant 0 : index
    %1 = vector.load %arg3[%c0_1, %c0_2] : memref<64x64xbf16, #tpu.memory_space<vmem>>, vector<64x64xbf16>
    %cst = arith.constant dense<0.000000e+00> : vector<16x64xf32>
    %2 = tpu.matmul %0, %1, %cst {dimension_numbers = #tpu.dot_dimension_numbers<[1], [0], [0], [1], [0, 0, 1, 1], [], []>} : vector<16x64xbf16>, vector<64x64xbf16>, vector<16x64xf32> -> vector<16x64xf32>
    %c0_3 = arith.constant 0 : index
    %c0_4 = arith.constant 0 : index
    %3 = vector.load %arg4[%c0_3, %c0_4] : memref<1x64xf32, #tpu.memory_space<vmem>>, vector<1x64xf32>
    %4 = vector.broadcast %3 : vector<1x64xf32> to vector<16x64xf32>
    %5 = arith.addf %2, %4 : vector<16x64xf32>
    %c0_5 = arith.constant 0 : index
    %c0_6 = arith.constant 0 : index
    %6 = vector.load %arg5[%c0_5, %c0_6] : memref<16x64xf32, #tpu.memory_space<vmem>>, vector<16x64xf32>
    %cst_7 = arith.constant 0.899999976 : f32
    %7 = vector.broadcast %cst_7 : f32 to vector<16x64xf32>
    %8 = arith.mulf %7, %5 : vector<16x64xf32>
    %9 = arith.addf %6, %8 : vector<16x64xf32>
    %c0_8 = arith.constant 0 : index
    %c0_9 = arith.constant 0 : index
    %10 = vector.load %arg6[%c0_8, %c0_9] : memref<16x64xf32, #tpu.memory_space<vmem>>, vector<16x64xf32>
    tpu.vector_store %arg6[%c0_8, %c0_9], %9 {strides = array<i32>} : memref<16x64xf32, #tpu.memory_space<vmem>>, vector<16x64xf32>,
    return
  }
  func.func @transform_0(%arg0: i32, %arg1: i32) -> (i32, i32) {
    %c0_i32 = arith.constant 0 : i32
    %c0_i32_0 = arith.constant 0 : i32
    return %arg0, %c0_i32 : i32, i32
  }
  func.func @transform_1(%arg0: i32, %arg1: i32) -> (i32, i32) {
    %c0_i32 = arith.constant 0 : i32
    %c0_i32_0 = arith.constant 0 : i32
    return %c0_i32, %arg1 : i32, i32
  }
  func.func @transform_2(%arg0: i32, %arg1: i32) -> (i32, i32) {
    %c0_i32 = arith.constant 0 : i32
    %c0_i32_0 = arith.constant 0 : i32
    return %c0_i32, %arg1 : i32, i32
  }
  func.func @transform_3(%arg0: i32, %arg1: i32) -> (i32, i32) {
    %c0_i32 = arith.constant 0 : i32
    return %arg0, %arg1 : i32, i32
  }
  func.func @transform_4(%arg0: i32, %arg1: i32) -> (i32, i32) {
    %c0_i32 = arith.constant 0 : i32
    return %arg0, %arg1 : i32, i32
  }
}

module attributes {stable_mosaic.version = 11 : i64} {
  func.func @_fused_linear_kernel(%arg0: i32, %arg1: i32, %arg2: memref<16x64xf32, #tpu.memory_space<vmem>>, %arg3: memref<64x256xbf16, #tpu.memory_space<vmem>>, %arg4: memref<1x256xf32, #tpu.memory_space<vmem>>, %arg5: memref<1x64xf32, #tpu.memory_space<vmem>>, %arg6: memref<1x64xf32, #tpu.memory_space<vmem>>, %arg7: memref<16x256xbf16, #tpu.memory_space<vmem>>, %arg8: memref<16x64xbf16, #tpu.memory_space<vmem>>) attributes {dimension_semantics = [#tpu.dimension_semantics<parallel>, #tpu.dimension_semantics<arbitrary>], iteration_bounds = array<i64: 1, 1>, scalar_prefetch = 0 : i64, scratch_operands = 1 : i64, tpu.core_type = #tpu.core_type<tc>, window_params = [{transform_indices = @transform_0, window_bounds = array<i64: 16, 64>}, {transform_indices = @transform_1, window_bounds = array<i64: 64, 256>}, {transform_indices = @transform_2, window_bounds = array<i64: 1, 256>}, {pipeline_mode = #tpu.pipeline_mode<synchronous>, transform_indices = @transform_3, window_bounds = array<i64: 1, 64>}, {pipeline_mode = #tpu.pipeline_mode<synchronous>, transform_indices = @transform_4, window_bounds = array<i64: 1, 64>}, {transform_indices = @transform_5, window_bounds = array<i64: 16, 256>}]} {
    %c0_i32 = arith.constant 0 : i32
    %0 = arith.cmpi eq, %arg1, %c0_i32 : i32
    %1 = arith.extui %0 : i1 to i32
    %c0_i32_0 = arith.constant 0 : i32
    %2 = arith.cmpi ne, %1, %c0_i32_0 : i32
    scf.if %2 {
      %c0_11 = arith.constant 0 : index
      %c0_12 = arith.constant 0 : index
      %19 = vector.load %arg2[%c0_11, %c0_12] : memref<16x64xf32, #tpu.memory_space<vmem>>, vector<16x64xf32>
      %cst_13 = arith.constant dense<0.000000e+00> : vector<16xf32>
      %20 = vector.multi_reduction <add>, %19, %cst_13 [1] : vector<16x64xf32> to vector<16xf32>
      %21 = vector.shape_cast %20 : vector<16xf32> to vector<16x1xf32>
      %cst_14 = arith.constant 6.400000e+01 : f32
      %22 = vector.broadcast %cst_14 : f32 to vector<16x1xf32>
      %23 = arith.divf %21, %22 : vector<16x1xf32>
      %24 = vector.broadcast %23 : vector<16x1xf32> to vector<16x64xf32>
      %25 = arith.subf %19, %24 : vector<16x64xf32>
      %26 = arith.mulf %25, %25 : vector<16x64xf32>
      %cst_15 = arith.constant dense<0.000000e+00> : vector<16xf32>
      %27 = vector.multi_reduction <add>, %26, %cst_15 [1] : vector<16x64xf32> to vector<16xf32>
      %28 = vector.shape_cast %27 : vector<16xf32> to vector<16x1xf32>
      %cst_16 = arith.constant 6.400000e+01 : f32
      %29 = vector.broadcast %cst_16 : f32 to vector<16x1xf32>
      %30 = arith.divf %28, %29 : vector<16x1xf32>
      %31 = vector.broadcast %23 : vector<16x1xf32> to vector<16x64xf32>
      %32 = arith.subf %19, %31 : vector<16x64xf32>
      %cst_17 = arith.constant 9.99999974E-6 : f32
      %33 = vector.broadcast %cst_17 : f32 to vector<16x1xf32>
      %34 = arith.addf %30, %33 : vector<16x1xf32>
      %35 = math.rsqrt %34 : vector<16x1xf32>
      %36 = vector.broadcast %35 : vector<16x1xf32> to vector<16x64xf32>
      %37 = arith.mulf %32, %36 : vector<16x64xf32>
      %c0_18 = arith.constant 0 : index
      %c0_19 = arith.constant 0 : index
      %38 = vector.load %arg5[%c0_18, %c0_19] : memref<1x64xf32, #tpu.memory_space<vmem>>, vector<1x64xf32>
      %39 = vector.broadcast %38 : vector<1x64xf32> to vector<16x64xf32>
      %40 = arith.mulf %37, %39 : vector<16x64xf32>
      %c0_20 = arith.constant 0 : index
      %c0_21 = arith.constant 0 : index
      %41 = vector.load %arg6[%c0_20, %c0_21] : memref<1x64xf32, #tpu.memory_space<vmem>>, vector<1x64xf32>
      %42 = vector.broadcast %41 : vector<1x64xf32> to vector<16x64xf32>
      %43 = arith.addf %40, %42 : vector<16x64xf32>
      %44 = arith.truncf %43 : vector<16x64xf32> to vector<16x64xbf16>
      %c0_22 = arith.constant 0 : index
      %c0_23 = arith.constant 0 : index
      %45 = vector.load %arg8[%c0_22, %c0_23] : memref<16x64xbf16, #tpu.memory_space<vmem>>, vector<16x64xbf16>
      tpu.vector_store %arg8[%c0_22, %c0_23], %44 {strides = array<i32>} : memref<16x64xbf16, #tpu.memory_space<vmem>>, vector<16x64xbf16>,
    } else {
    }
    %c0 = arith.constant 0 : index
    %c0_1 = arith.constant 0 : index
    %3 = vector.load %arg8[%c0, %c0_1] : memref<16x64xbf16, #tpu.memory_space<vmem>>, vector<16x64xbf16>
    %c0_2 = arith.constant 0 : index
    %c0_3 = arith.constant 0 : index
    %4 = vector.load %arg3[%c0_2, %c0_3] : memref<64x256xbf16, #tpu.memory_space<vmem>>, vector<64x256xbf16>
    %cst = arith.constant dense<0.000000e+00> : vector<16x256xf32>
    %5 = tpu.matmul %3, %4, %cst {dimension_numbers = #tpu.dot_dimension_numbers<[1], [0], [0], [1], [0, 0, 1, 1], [], []>} : vector<16x64xbf16>, vector<64x256xbf16>, vector<16x256xf32> -> vector<16x256xf32>
    %c0_4 = arith.constant 0 : index
    %c0_5 = arith.constant 0 : index
    %6 = vector.load %arg4[%c0_4, %c0_5] : memref<1x256xf32, #tpu.memory_space<vmem>>, vector<1x256xf32>
    %7 = vector.broadcast %6 : vector<1x256xf32> to vector<16x256xf32>
    %8 = arith.addf %5, %7 : vector<16x256xf32>
    %cst_6 = arith.constant 5.000000e-01 : f32
    %9 = vector.broadcast %cst_6 : f32 to vector<16x256xf32>
    %10 = arith.mulf %9, %8 : vector<16x256xf32>
    %cst_7 = arith.constant 0.707106769 : f32
    %11 = vector.broadcast %cst_7 : f32 to vector<16x256xf32>
    %12 = arith.mulf %8, %11 : vector<16x256xf32>
    %13 = math.erf %12 : vector<16x256xf32>
    %cst_8 = arith.constant 1.000000e+00 : f32
    %14 = vector.broadcast %cst_8 : f32 to vector<16x256xf32>
    %15 = arith.addf %14, %13 : vector<16x256xf32>
    %16 = arith.mulf %10, %15 : vector<16x256xf32>
    %17 = arith.truncf %16 : vector<16x256xf32> to vector<16x256xbf16>
    %c0_9 = arith.constant 0 : index
    %c0_10 = arith.constant 0 : index
    %18 = vector.load %arg7[%c0_9, %c0_10] : memref<16x256xbf16, #tpu.memory_space<vmem>>, vector<16x256xbf16>
    tpu.vector_store %arg7[%c0_9, %c0_10], %17 {strides = array<i32>} : memref<16x256xbf16, #tpu.memory_space<vmem>>, vector<16x256xbf16>,
    return
  }
  func.func @transform_0(%arg0: i32, %arg1: i32) -> (i32, i32) {
    %c0_i32 = arith.constant 0 : i32
    %c0_i32_0 = arith.constant 0 : i32
    return %arg0, %c0_i32 : i32, i32
  }
  func.func @transform_1(%arg0: i32, %arg1: i32) -> (i32, i32) {
    %c0_i32 = arith.constant 0 : i32
    %c0_i32_0 = arith.constant 0 : i32
    return %c0_i32, %arg1 : i32, i32
  }
  func.func @transform_2(%arg0: i32, %arg1: i32) -> (i32, i32) {
    %c0_i32 = arith.constant 0 : i32
    %c0_i32_0 = arith.constant 0 : i32
    return %c0_i32, %arg1 : i32, i32
  }
  func.func @transform_3(%arg0: i32, %arg1: i32) -> (i32, i32) {
    %c0_i32 = arith.constant 0 : i32
    %c0_i32_0 = arith.constant 0 : i32
    %c0_i32_1 = arith.constant 0 : i32
    return %c0_i32, %c0_i32_0 : i32, i32
  }
  func.func @transform_4(%arg0: i32, %arg1: i32) -> (i32, i32) {
    %c0_i32 = arith.constant 0 : i32
    %c0_i32_0 = arith.constant 0 : i32
    %c0_i32_1 = arith.constant 0 : i32
    return %c0_i32, %c0_i32_0 : i32, i32
  }
  func.func @transform_5(%arg0: i32, %arg1: i32) -> (i32, i32) {
    %c0_i32 = arith.constant 0 : i32
    return %arg0, %arg1 : i32, i32
  }
}

module attributes {stable_mosaic.version = 11 : i64} {
  func.func @_lm_head_kernel(%arg0: i32, %arg1: i32, %arg2: memref<16x64xf32, #tpu.memory_space<vmem>>, %arg3: memref<1x64xf32, #tpu.memory_space<vmem>>, %arg4: memref<1x64xf32, #tpu.memory_space<vmem>>, %arg5: memref<512x64xbf16, #tpu.memory_space<vmem>>, %arg6: memref<16x512xf32, #tpu.memory_space<vmem>>, %arg7: memref<16x64xbf16, #tpu.memory_space<vmem>>) attributes {dimension_semantics = [#tpu.dimension_semantics<parallel>, #tpu.dimension_semantics<arbitrary>], iteration_bounds = array<i64: 1, 1>, scalar_prefetch = 0 : i64, scratch_operands = 1 : i64, tpu.core_type = #tpu.core_type<tc>, window_params = [{transform_indices = @transform_0, window_bounds = array<i64: 16, 64>}, {pipeline_mode = #tpu.pipeline_mode<synchronous>, transform_indices = @transform_1, window_bounds = array<i64: 1, 64>}, {pipeline_mode = #tpu.pipeline_mode<synchronous>, transform_indices = @transform_2, window_bounds = array<i64: 1, 64>}, {transform_indices = @transform_3, window_bounds = array<i64: 512, 64>}, {transform_indices = @transform_4, window_bounds = array<i64: 16, 512>}]} {
    %c0_i32 = arith.constant 0 : i32
    %0 = arith.cmpi eq, %arg1, %c0_i32 : i32
    %1 = arith.extui %0 : i1 to i32
    %c0_i32_0 = arith.constant 0 : i32
    %2 = arith.cmpi ne, %1, %c0_i32_0 : i32
    scf.if %2 {
      %c0_6 = arith.constant 0 : index
      %c0_7 = arith.constant 0 : index
      %7 = vector.load %arg2[%c0_6, %c0_7] : memref<16x64xf32, #tpu.memory_space<vmem>>, vector<16x64xf32>
      %cst_8 = arith.constant dense<0.000000e+00> : vector<16xf32>
      %8 = vector.multi_reduction <add>, %7, %cst_8 [1] : vector<16x64xf32> to vector<16xf32>
      %9 = vector.shape_cast %8 : vector<16xf32> to vector<16x1xf32>
      %cst_9 = arith.constant 6.400000e+01 : f32
      %10 = vector.broadcast %cst_9 : f32 to vector<16x1xf32>
      %11 = arith.divf %9, %10 : vector<16x1xf32>
      %12 = vector.broadcast %11 : vector<16x1xf32> to vector<16x64xf32>
      %13 = arith.subf %7, %12 : vector<16x64xf32>
      %14 = arith.mulf %13, %13 : vector<16x64xf32>
      %cst_10 = arith.constant dense<0.000000e+00> : vector<16xf32>
      %15 = vector.multi_reduction <add>, %14, %cst_10 [1] : vector<16x64xf32> to vector<16xf32>
      %16 = vector.shape_cast %15 : vector<16xf32> to vector<16x1xf32>
      %cst_11 = arith.constant 6.400000e+01 : f32
      %17 = vector.broadcast %cst_11 : f32 to vector<16x1xf32>
      %18 = arith.divf %16, %17 : vector<16x1xf32>
      %19 = vector.broadcast %11 : vector<16x1xf32> to vector<16x64xf32>
      %20 = arith.subf %7, %19 : vector<16x64xf32>
      %cst_12 = arith.constant 9.99999974E-6 : f32
      %21 = vector.broadcast %cst_12 : f32 to vector<16x1xf32>
      %22 = arith.addf %18, %21 : vector<16x1xf32>
      %23 = math.rsqrt %22 : vector<16x1xf32>
      %24 = vector.broadcast %23 : vector<16x1xf32> to vector<16x64xf32>
      %25 = arith.mulf %20, %24 : vector<16x64xf32>
      %c0_13 = arith.constant 0 : index
      %c0_14 = arith.constant 0 : index
      %26 = vector.load %arg3[%c0_13, %c0_14] : memref<1x64xf32, #tpu.memory_space<vmem>>, vector<1x64xf32>
      %27 = vector.broadcast %26 : vector<1x64xf32> to vector<16x64xf32>
      %28 = arith.mulf %25, %27 : vector<16x64xf32>
      %c0_15 = arith.constant 0 : index
      %c0_16 = arith.constant 0 : index
      %29 = vector.load %arg4[%c0_15, %c0_16] : memref<1x64xf32, #tpu.memory_space<vmem>>, vector<1x64xf32>
      %30 = vector.broadcast %29 : vector<1x64xf32> to vector<16x64xf32>
      %31 = arith.addf %28, %30 : vector<16x64xf32>
      %32 = arith.truncf %31 : vector<16x64xf32> to vector<16x64xbf16>
      %c0_17 = arith.constant 0 : index
      %c0_18 = arith.constant 0 : index
      %33 = vector.load %arg7[%c0_17, %c0_18] : memref<16x64xbf16, #tpu.memory_space<vmem>>, vector<16x64xbf16>
      tpu.vector_store %arg7[%c0_17, %c0_18], %32 {strides = array<i32>} : memref<16x64xbf16, #tpu.memory_space<vmem>>, vector<16x64xbf16>,
    } else {
    }
    %c0 = arith.constant 0 : index
    %c0_1 = arith.constant 0 : index
    %3 = vector.load %arg5[%c0, %c0_1] : memref<512x64xbf16, #tpu.memory_space<vmem>>, vector<512x64xbf16>
    %c0_2 = arith.constant 0 : index
    %c0_3 = arith.constant 0 : index
    %4 = vector.load %arg7[%c0_2, %c0_3] : memref<16x64xbf16, #tpu.memory_space<vmem>>, vector<16x64xbf16>
    %cst = arith.constant dense<0.000000e+00> : vector<16x512xf32>
    %5 = tpu.matmul %4, %3, %cst {dimension_numbers = #tpu.dot_dimension_numbers<[1], [1], [0], [0], [0, 0, 1, 0], [], []>} : vector<16x64xbf16>, vector<512x64xbf16>, vector<16x512xf32> -> vector<16x512xf32>
    %c0_4 = arith.constant 0 : index
    %c0_5 = arith.constant 0 : index
    %6 = vector.load %arg6[%c0_4, %c0_5] : memref<16x512xf32, #tpu.memory_space<vmem>>, vector<16x512xf32>
    tpu.vector_store %arg6[%c0_4, %c0_5], %5 {strides = array<i32>} : memref<16x512xf32, #tpu.memory_space<vmem>>, vector<16x512xf32>,
    return
  }
  func.func @transform_0(%arg0: i32, %arg1: i32) -> (i32, i32) {
    %c0_i32 = arith.constant 0 : i32
    %c0_i32_0 = arith.constant 0 : i32
    return %arg0, %c0_i32 : i32, i32
  }
  func.func @transform_1(%arg0: i32, %arg1: i32) -> (i32, i32) {
    %c0_i32 = arith.constant 0 : i32
    %c0_i32_0 = arith.constant 0 : i32
    %c0_i32_1 = arith.constant 0 : i32
    return %c0_i32, %c0_i32_0 : i32, i32
  }
  func.func @transform_2(%arg0: i32, %arg1: i32) -> (i32, i32) {
    %c0_i32 = arith.constant 0 : i32
    %c0_i32_0 = arith.constant 0 : i32
    %c0_i32_1 = arith.constant 0 : i32
    return %c0_i32, %c0_i32_0 : i32, i32
  }
  func.func @transform_3(%arg0: i32, %arg1: i32) -> (i32, i32) {
    %c0_i32 = arith.constant 0 : i32
    %c0_i32_0 = arith.constant 0 : i32
    return %arg1, %c0_i32 : i32, i32
  }
  func.func @transform_4(%arg0: i32, %arg1: i32) -> (i32, i32) {
    %c0_i32 = arith.constant 0 : i32
    return %arg0, %arg1 : i32, i32
  }
}

module attributes {stable_mosaic.version = 11 : i64} {
  func.func @_fused_linear_kernel(%arg0: i32, %arg1: i32, %arg2: memref<16x256xbf16, #tpu.memory_space<vmem>>, %arg3: memref<256x64xbf16, #tpu.memory_space<vmem>>, %arg4: memref<1x64xf32, #tpu.memory_space<vmem>>, %arg5: memref<16x64xf32, #tpu.memory_space<vmem>>, %arg6: memref<16x64xf32, #tpu.memory_space<vmem>>) attributes {dimension_semantics = [#tpu.dimension_semantics<parallel>, #tpu.dimension_semantics<parallel>], iteration_bounds = array<i64: 1, 1>, scalar_prefetch = 0 : i64, scratch_operands = 0 : i64, tpu.core_type = #tpu.core_type<tc>, window_params = [{transform_indices = @transform_0, window_bounds = array<i64: 16, 256>}, {transform_indices = @transform_1, window_bounds = array<i64: 256, 64>}, {transform_indices = @transform_2, window_bounds = array<i64: 1, 64>}, {transform_indices = @transform_3, window_bounds = array<i64: 16, 64>}, {transform_indices = @transform_4, window_bounds = array<i64: 16, 64>}]} {
    %c0 = arith.constant 0 : index
    %c0_0 = arith.constant 0 : index
    %0 = vector.load %arg2[%c0, %c0_0] : memref<16x256xbf16, #tpu.memory_space<vmem>>, vector<16x256xbf16>
    %c0_1 = arith.constant 0 : index
    %c0_2 = arith.constant 0 : index
    %1 = vector.load %arg3[%c0_1, %c0_2] : memref<256x64xbf16, #tpu.memory_space<vmem>>, vector<256x64xbf16>
    %cst = arith.constant dense<0.000000e+00> : vector<16x64xf32>
    %2 = tpu.matmul %0, %1, %cst {dimension_numbers = #tpu.dot_dimension_numbers<[1], [0], [0], [1], [0, 0, 1, 1], [], []>} : vector<16x256xbf16>, vector<256x64xbf16>, vector<16x64xf32> -> vector<16x64xf32>
    %c0_3 = arith.constant 0 : index
    %c0_4 = arith.constant 0 : index
    %3 = vector.load %arg4[%c0_3, %c0_4] : memref<1x64xf32, #tpu.memory_space<vmem>>, vector<1x64xf32>
    %4 = vector.broadcast %3 : vector<1x64xf32> to vector<16x64xf32>
    %5 = arith.addf %2, %4 : vector<16x64xf32>
    %c0_5 = arith.constant 0 : index
    %c0_6 = arith.constant 0 : index
    %6 = vector.load %arg5[%c0_5, %c0_6] : memref<16x64xf32, #tpu.memory_space<vmem>>, vector<16x64xf32>
    %cst_7 = arith.constant 0.899999976 : f32
    %7 = vector.broadcast %cst_7 : f32 to vector<16x64xf32>
    %8 = arith.mulf %7, %5 : vector<16x64xf32>
    %9 = arith.addf %6, %8 : vector<16x64xf32>
    %c0_8 = arith.constant 0 : index
    %c0_9 = arith.constant 0 : index
    %10 = vector.load %arg6[%c0_8, %c0_9] : memref<16x64xf32, #tpu.memory_space<vmem>>, vector<16x64xf32>
    tpu.vector_store %arg6[%c0_8, %c0_9], %9 {strides = array<i32>} : memref<16x64xf32, #tpu.memory_space<vmem>>, vector<16x64xf32>,
    return
  }
  func.func @transform_0(%arg0: i32, %arg1: i32) -> (i32, i32) {
    %c0_i32 = arith.constant 0 : i32
    %c0_i32_0 = arith.constant 0 : i32
    return %arg0, %c0_i32 : i32, i32
  }
  func.func @transform_1(%arg0: i32, %arg1: i32) -> (i32, i32) {
    %c0_i32 = arith.constant 0 : i32
    %c0_i32_0 = arith.constant 0 : i32
    return %c0_i32, %arg1 : i32, i32
  }
  func.func @transform_2(%arg0: i32, %arg1: i32) -> (i32, i32) {
    %c0_i32 = arith.constant 0 : i32
    %c0_i32_0 = arith.constant 0 : i32
    return %c0_i32, %arg1 : i32, i32
  }
  func.func @transform_3(%arg0: i32, %arg1: i32) -> (i32, i32) {
    %c0_i32 = arith.constant 0 : i32
    return %arg0, %arg1 : i32, i32
  }
  func.func @transform_4(%arg0: i32, %arg1: i32) -> (i32, i32) {
    %c0_i32 = arith.constant 0 : i32
    return %arg0, %arg1 : i32, i32
  }
}

</mosaic_0001>

<llo_original>
// kernel: gpt2_forward.11
$region0: #{gpt2_forward.11}
  #allocation0 [shape = 'u32[]', space=smem, size = 0x4, offset = 0x4, fixed_abs, tag = 'smem constant byte address 0x4 - core index']
  #allocation1 [shape = 'u32[72,128]{1,0:T(1,128)}', space=vmem, size = 0x9000, scoped, tag = 'internal scratch']
  #allocation2 [shape = 'bf16[16,64]{1,0:T(8,128)(2,1)}', space=vmem, size = 0x1000, scoped, tag = 'scratch operand']
  %s0 = inlined_call_operand.vmem [shape: f32[16,64], index: 0, kind: input, shape index: {}]
  %s1 = inlined_call_operand.vmem [shape: bf16[64,192], index: 1, kind: input, shape index: {}]
  %s2 = inlined_call_operand.vmem [shape: f32[1,192], index: 2, kind: input, shape index: {}]
  %s3 = inlined_call_operand.vmem [shape: f32[1,64], index: 3, kind: input, shape index: {}]
  %s4 = inlined_call_operand.vmem [shape: f32[1,64], index: 4, kind: input, shape index: {}]
  %s5 = inlined_call_operand.vmem [shape: bf16[16,192], index: 5, kind: output, shape index: {}]
  %s6 = sld [smem:[#allocation0]]
  $region34: #{gpt2_forward.11} parent=0
    _
  %s8 = ssub.s32 1, %s6
  %s9 = scalar_select 0, %s8, %s6
  // Predicated region
  $region2: #{gpt2_forward.11} parent=0 // pred_check
    _
  $region3: #{gpt2_forward.11} parent=0 // pred_check_branch
    %11 = sbr.rel (0) target = $region5
  $region4: #{gpt2_forward.11} parent=0 // pred_region
    _
  $region5: #{gpt2_forward.11} parent=0 // pred_fallthru
    _
  // Predicated region
  $region6: #{gpt2_forward.11} parent=0 // pred_check
    _
  $region7: #{gpt2_forward.11} parent=0 // pred_check_branch
    %13 = sbr.rel (0) target = $region9
  $region8: #{gpt2_forward.11} parent=0 // pred_region
    _
  $region9: #{gpt2_forward.11} parent=0 // pred_fallthru
    _
  // Predicated region
  $region10: #{gpt2_forward.11} parent=0 // pred_check
    _
  $region11: #{gpt2_forward.11} parent=0 // pred_check_branch
    %15 = sbr.rel (0) target = $region13
  $region12: #{gpt2_forward.11} parent=0 // pred_region
    _
  $region13: #{gpt2_forward.11} parent=0 // pred_fallthru
    _
  // Predicated region
  $region14: #{gpt2_forward.11} parent=0 // pred_check
    _
  $region15: #{gpt2_forward.11} parent=0 // pred_check_branch
    %17 = sbr.rel (0) target = $region17
  $region16: #{gpt2_forward.11} parent=0 // pred_region
    _
  $region17: #{gpt2_forward.11} parent=0 // pred_fallthru
    _
  // Predicated region
  $region18: #{gpt2_forward.11} parent=0 // pred_check
    _
  $region19: #{gpt2_forward.11} parent=0 // pred_check_branch
    %19 = sbr.rel (0) target = $region21
  $region20: #{gpt2_forward.11} parent=0 // pred_region
    _
  $region21: #{gpt2_forward.11} parent=0 // pred_fallthru
    _
  %p21 = scmp.eq.s32.totalorder 0, 0
  // Predicated region
  $region22: #{gpt2_forward.11} parent=0 // pred_check
    %p22 = pneg %p21
  $region23: #{gpt2_forward.11} parent=0 // pred_check_branch
    %24 = sbr.rel (%p22) target = $region25
  $region24: #{gpt2_forward.11} parent=0 // pred_region
    %v25 = vld [vmem:[%s0] sm:$0xff]
    %v26 = vld [vmem:[%s0 + $0x8] sm:$0xff]
    %vm27 = vcmask 523264
    %v28 = vsel %vm27, %v25, 0.0
    %29 = vadd.xlane.f32.xlu0 %v28
    %v30 = vpop.xlane.xlu0 %29
    %v31 = vsel %vm27, %v26, 0.0
    %32 = vadd.xlane.f32.xlu0 %v31
    %v33 = vpop.xlane.xlu0 %32
    %v34 = vrcp.pop 64.0
    %v35 = vmul.f32 64.0, %v34
    %v36 = vsub.f32 1.0, %v35
    %v37 = vmul.f32 %v34, %v36
    %v38 = vadd.f32 %v34, %v37
    %vm39 = vweird.f32 %v34
    %v40 = vsel %vm39, %v34, %v38
    %v41 = vmul.f32 %v30, %v40
    %v42 = vmul.f32 %v33, %v40
    %v43 = vsub.f32 %v25, %v41
    %v44 = vsub.f32 %v26, %v42
    %v45 = vmul.f32 %v43, %v43
    %v46 = vmul.f32 %v44, %v44
    %v47 = vsel %vm27, %v45, 0.0
    %48 = vadd.xlane.f32.xlu0 %v47
    %v49 = vpop.xlane.xlu0 %48
    %v50 = vsel %vm27, %v46, 0.0
    %51 = vadd.xlane.f32.xlu0 %v50
    %v52 = vpop.xlane.xlu0 %51
    %v53 = vmul.f32 %v49, %v40
    %v54 = vmul.f32 %v52, %v40
    %v55 = vadd.f32 %v53, 1e-05
    %v56 = vadd.f32 %v54, 1e-05
    %v57 = vrsqrt.pop %v55
    %v58 = vmul.f32 %v57, %v55
    %v59 = vmul.f32 %v58, %v57
    %v60 = vmul.f32 0.5, %v59
    %v61 = vsub.f32 1.5, %v60
    %v62 = vmul.f32 %v57, %v61
    %vm63 = vweird.f32 %v55
    %vm64 = vweird.f32 %v57
    %vm65 = vmor %vm63, %vm64
    %v66 = vsel %vm65, %v57, %v62
    %v67 = vrsqrt.pop %v56
    %v68 = vmul.f32 %v67, %v56
    %v69 = vmul.f32 %v68, %v67
    %v70 = vmul.f32 0.5, %v69
    %v71 = vsub.f32 1.5, %v70
    %v72 = vmul.f32 %v67, %v71
    %vm73 = vweird.f32 %v56
    %vm74 = vweird.f32 %v67
    %vm75 = vmor %vm73, %vm74
    %v76 = vsel %vm75, %v67, %v72
    %v77 = vmul.f32 %v43, %v66
    %v78 = vmul.f32 %v44, %v76
    %v79 = vld [vmem:[%s3] sm:$0x1]
    %v81 = vperm.slane %v79, 0
    %v83 = vmul.f32 %v77, %v81
    %v84 = vmul.f32 %v78, %v81
    %v85 = vld [vmem:[%s4] sm:$0x1]
    %v87 = vperm.slane %v85, 0
    %v89 = vadd.f32 %v83, %v87
    %v90 = vadd.f32 %v84, %v87
    %v91 = vpack.c.bf16 %v89, %v89
    %v92 = vpack.c.bf16 %v90, %v90
    %vm93 = vcmask 519168
    %94 = vst.msk [vmem:[#allocation2] sm:$0xf] %vm93, %v91
    %95 = vst.msk [vmem:[#allocation2 + $0x4] sm:$0xf] %vm93, %v92
  $region25: #{gpt2_forward.11} parent=0 // pred_fallthru
    _
  %v96 = vld [vmem:[#allocation2] sm:$0xf]
  %v97 = vld [vmem:[#allocation2 + $0x4] sm:$0xf]
  %v98 = vld [vmem:[%s1] sm:$0xff]
  %v99 = vld [vmem:[%s1 + $0x8] sm:$0xff]
  %v100 = vld [vmem:[%s1 + $0x10] sm:$0xff]
  %v101 = vld [vmem:[%s1 + $0x18] sm:$0xff]
  %v102 = vld [vmem:[%s1 + $0x20] sm:$0xff]
  %v103 = vld [vmem:[%s1 + $0x28] sm:$0xff]
  %v104 = vld [vmem:[%s1 + $0x30] sm:$0xff]
  %v105 = vld [vmem:[%s1 + $0x38] sm:$0xff]
  %v106 = vld [vmem:[%s2] sm:$0x3]
  %v108 = vperm.slane %v106, 0
  %v109 = vperm.slane %v106, 1
  %v114 = vunpack.c.l.b16 %v96
  %v115 = vunpack.c.l.b16 %v97
  %v116 = vpack.c.b16 %v115, %v114
  %v125 = vunpack.c.l.b16 %v98
  %v126 = vunpack.c.h.b16 %v98
  %v127 = vunpack.c.l.b16 %v99
  %v128 = vunpack.c.h.b16 %v99
  %v129 = vunpack.c.l.b16 %v100
  %v130 = vunpack.c.h.b16 %v100
  %v131 = vunpack.c.l.b16 %v101
  %v132 = vunpack.c.h.b16 %v101
  %v133 = vunpack.c.l.b16 %v102
  %v134 = vunpack.c.h.b16 %v102
  %v135 = vunpack.c.l.b16 %v103
  %v136 = vunpack.c.h.b16 %v103
  %v137 = vunpack.c.l.b16 %v104
  %v138 = vunpack.c.h.b16 %v104
  %v139 = vunpack.c.l.b16 %v105
  %v140 = vunpack.c.h.b16 %v105
  %v141 = vpack.c.b16 %v127, %v125
  %v142 = vpack.c.b16 %v128, %v126
  %v143 = vpack.c.b16 %v131, %v129
  %v144 = vpack.c.b16 %v132, %v130
  %v145 = vpack.c.b16 %v135, %v133
  %v146 = vpack.c.b16 %v136, %v134
  %v147 = vpack.c.b16 %v139, %v137
  %v148 = vpack.c.b16 %v140, %v138
  %vm157 = vcmask 523264
  %v159 = vsel %vm157, %v116, 0
  %161 = vmatpush.bf16.msra.mxu0 0
  %162 = vmatpush.bf16.msra.mxu0 0
  %163 = vmatpush.bf16.msra.mxu0 0
  %164 = vmatpush.bf16.msra.mxu0 0
  %165 = vmatpush.bf16.msra.mxu0 %v147
  %166 = vmatpush.bf16.msra.mxu0 %v145
  %167 = vmatpush.bf16.msra.mxu0 %v143
  %168 = vmatpush.bf16.msra.mxu0 %v141
  %169 = vmatmul.bf16.gmra.mxu0 %v159
  %v170 = vpop.f32.mrf.mxu0
  %v171 = vadd.f32 %v108, %v170
  %v172 = vpop.f32.mrf.mxu0
  %v173 = vadd.f32 %v108, %v172
  %174 = vdwg.mxu0
  %175 = vmatpush.bf16.msra.mxu0 0
  %176 = vmatpush.bf16.msra.mxu0 0
  %177 = vmatpush.bf16.msra.mxu0 0
  %178 = vmatpush.bf16.msra.mxu0 0
  %179 = vmatpush.bf16.msra.mxu0 %v148
  %180 = vmatpush.bf16.msra.mxu0 %v146
  %181 = vmatpush.bf16.msra.mxu0 %v144
  %182 = vmatpush.bf16.msra.mxu0 %v142
  %183 = vmatmul.bf16.gmra.mxu0 %v159
  %v184 = vpop.f32.mrf.mxu0
  %v185 = vadd.f32 %v109, %v184
  %v186 = vpop.f32.mrf.mxu0
  %v187 = vadd.f32 %v109, %v186
  %188 = vdwg.mxu0
  %v189 = vpack.c.bf16 %v185, %v171
  %v190 = vpack.c.bf16 %v187, %v173
  %vm191 = vcmask 1043456
  %vm192 = vcmask 523268
  %vm193 = vmor %vm192, %vm191
  %194 = vst.msk [vmem:[%s5] sm:$0xff] %vm193, %v189
  %195 = vst.msk [vmem:[%s5 + $0x8] sm:$0xff] %vm193, %v190
  // Predicated region
  $region26: #{gpt2_forward.11} parent=0 // pred_check
    _
  $region27: #{gpt2_forward.11} parent=0 // pred_check_branch
    %197 = sbr.rel (0) target = $region29
  $region28: #{gpt2_forward.11} parent=0 // pred_region
    _
  $region29: #{gpt2_forward.11} parent=0 // pred_fallthru
    _
  // Predicated region
  $region30: #{gpt2_forward.11} parent=0 // pred_check
    _
  $region31: #{gpt2_forward.11} parent=0 // pred_check_branch
    %199 = sbr.rel (0) target = $region33
  $region32: #{gpt2_forward.11} parent=0 // pred_region
    _
  $region33: #{gpt2_forward.11} parent=0 // pred_fallthru
    _

// kernel: gpt2_forward.13
$region0: #{gpt2_forward.13}
  #allocation0 [shape = 'u32[]', space=smem, size = 0x4, offset = 0x4, fixed_abs, tag = 'smem constant byte address 0x4 - core index']
  #allocation1 [shape = 'u32[72,128]{1,0:T(1,128)}', space=vmem, size = 0x9000, scoped, tag = 'internal scratch']
  %s0 = inlined_call_operand.vmem [shape: bf16[16,64], index: 0, kind: input, shape index: {}]
  %s1 = inlined_call_operand.vmem [shape: bf16[64,64], index: 1, kind: input, shape index: {}]
  %s2 = inlined_call_operand.vmem [shape: f32[1,64], index: 2, kind: input, shape index: {}]
  %s3 = inlined_call_operand.vmem [shape: f32[16,64], index: 3, kind: input, shape index: {}]
  %s4 = inlined_call_operand.vmem [shape: f32[16,64], index: 4, kind: output, shape index: {}]
  %s5 = sld [smem:[#allocation0]]
  $region26: #{gpt2_forward.13} parent=0
    _
  %s7 = ssub.s32 1, %s5
  %s8 = scalar_select 0, %s7, %s5
  // Predicated region
  $region2: #{gpt2_forward.13} parent=0 // pred_check
    _
  $region3: #{gpt2_forward.13} parent=0 // pred_check_branch
    %10 = sbr.rel (0) target = $region5
  $region4: #{gpt2_forward.13} parent=0 // pred_region
    _
  $region5: #{gpt2_forward.13} parent=0 // pred_fallthru
    _
  // Predicated region
  $region6: #{gpt2_forward.13} parent=0 // pred_check
    _
  $region7: #{gpt2_forward.13} parent=0 // pred_check_branch
    %12 = sbr.rel (0) target = $region9
  $region8: #{gpt2_forward.13} parent=0 // pred_region
    _
  $region9: #{gpt2_forward.13} parent=0 // pred_fallthru
    _
  // Predicated region
  $region10: #{gpt2_forward.13} parent=0 // pred_check
    _
  $region11: #{gpt2_forward.13} parent=0 // pred_check_branch
    %14 = sbr.rel (0) target = $region13
  $region12: #{gpt2_forward.13} parent=0 // pred_region
    _
  $region13: #{gpt2_forward.13} parent=0 // pred_fallthru
    _
  // Predicated region
  $region14: #{gpt2_forward.13} parent=0 // pred_check
    _
  $region15: #{gpt2_forward.13} parent=0 // pred_check_branch
    %16 = sbr.rel (0) target = $region17
  $region16: #{gpt2_forward.13} parent=0 // pred_region
    _
  $region17: #{gpt2_forward.13} parent=0 // pred_fallthru
    _
  %v18 = vld [vmem:[%s0] sm:$0xf]
  %v19 = vld [vmem:[%s0 + $0x4] sm:$0xf]
  %v20 = vld [vmem:[%s1] sm:$0xf]
  %v21 = vld [vmem:[%s1 + $0x4] sm:$0xf]
  %v22 = vld [vmem:[%s1 + $0x8] sm:$0xf]
  %v23 = vld [vmem:[%s1 + $0xc] sm:$0xf]
  %v24 = vld [vmem:[%s1 + $0x10] sm:$0xf]
  %v25 = vld [vmem:[%s1 + $0x14] sm:$0xf]
  %v26 = vld [vmem:[%s1 + $0x18] sm:$0xf]
  %v27 = vld [vmem:[%s1 + $0x1c] sm:$0xf]
  %v28 = vld [vmem:[%s2] sm:$0x1]
  %v30 = vperm.slane %v28, 0
  %v34 = vunpack.c.l.b16 %v18
  %v35 = vunpack.c.l.b16 %v19
  %v36 = vpack.c.b16 %v35, %v34
  %v45 = vunpack.c.l.b16 %v20
  %v46 = vunpack.c.l.b16 %v21
  %v47 = vunpack.c.l.b16 %v22
  %v48 = vunpack.c.l.b16 %v23
  %v49 = vunpack.c.l.b16 %v24
  %v50 = vunpack.c.l.b16 %v25
  %v51 = vunpack.c.l.b16 %v26
  %v52 = vunpack.c.l.b16 %v27
  %v53 = vpack.c.b16 %v46, %v45
  %v54 = vpack.c.b16 %v48, %v47
  %v55 = vpack.c.b16 %v50, %v49
  %v56 = vpack.c.b16 %v52, %v51
  %vm61 = vcmask 523264
  %v63 = vsel %vm61, %v36, 0
  %65 = vmatpush.bf16.msra.mxu0 0
  %66 = vmatpush.bf16.msra.mxu0 0
  %67 = vmatpush.bf16.msra.mxu0 0
  %68 = vmatpush.bf16.msra.mxu0 0
  %69 = vmatpush.bf16.msra.mxu0 %v56
  %70 = vmatpush.bf16.msra.mxu0 %v55
  %71 = vmatpush.bf16.msra.mxu0 %v54
  %72 = vmatpush.bf16.msra.mxu0 %v53
  %73 = vmatmul.bf16.gmra.mxu0 %v63
  %v74 = vpop.f32.mrf.mxu0
  %v75 = vadd.f32 %v30, %v74
  %v76 = vpop.f32.mrf.mxu0
  %v77 = vadd.f32 %v30, %v76
  %78 = vdwg.mxu0
  %v79 = vld [vmem:[%s3] sm:$0xff]
  %v80 = vld [vmem:[%s3 + $0x8] sm:$0xff]
  %v81 = vmul.f32 %v75, 0.9
  %v82 = vmul.f32 %v77, 0.9
  %v83 = vadd.f32 %v79, %v81
  %v84 = vadd.f32 %v80, %v82
  %85 = vst.msk [vmem:[%s4] sm:$0xff] %vm61, %v83
  %86 = vst.msk [vmem:[%s4 + $0x8] sm:$0xff] %vm61, %v84
  // Predicated region
  $region18: #{gpt2_forward.13} parent=0 // pred_check
    _
  $region19: #{gpt2_forward.13} parent=0 // pred_check_branch
    %88 = sbr.rel (0) target = $region21
  $region20: #{gpt2_forward.13} parent=0 // pred_region
    _
  $region21: #{gpt2_forward.13} parent=0 // pred_fallthru
    _
  // Predicated region
  $region22: #{gpt2_forward.13} parent=0 // pred_check
    _
  $region23: #{gpt2_forward.13} parent=0 // pred_check_branch
    %90 = sbr.rel (0) target = $region25
  $region24: #{gpt2_forward.13} parent=0 // pred_region
    _
  $region25: #{gpt2_forward.13} parent=0 // pred_fallthru
    _

// kernel: gpt2_forward.12
$region0: #{gpt2_forward.12}
  #allocation0 [shape = 'u32[]', space=smem, size = 0x4, offset = 0x4, fixed_abs, tag = 'smem constant byte address 0x4 - core index']
  #allocation1 [shape = 'u32[72,128]{1,0:T(1,128)}', space=vmem, size = 0x9000, scoped, tag = 'internal scratch']
  #allocation2 [shape = 'f32[8,1]{1,0:T(8,128)}', space=vmem, size = 0x1000, scoped, tag = 'scratch operand']
  #allocation3 [shape = 'f32[8,1]{1,0:T(8,128)}', space=vmem, size = 0x1000, scoped, tag = 'scratch operand']
  #allocation4 [shape = 'f32[8,16]{1,0:T(8,128)}', space=vmem, size = 0x1000, scoped, tag = 'scratch operand']
  %s0 = inlined_call_operand.vmem [shape: bf16[8,8,16], index: 0, kind: input, shape index: {}]
  %s1 = inlined_call_operand.vmem [shape: bf16[8,8,16], index: 1, kind: input, shape index: {}]
  %s2 = inlined_call_operand.vmem [shape: bf16[8,8,16], index: 2, kind: input, shape index: {}]
  %s3 = inlined_call_operand.vmem [shape: bf16[8,8,16], index: 3, kind: output, shape index: {}]
  %s4 = sld [smem:[#allocation0]]
  $region53: #{gpt2_forward.12} parent=0
    _
  %s6 = ssub.s32 1, %s4
  %s7 = scalar_select 0, %s6, %s4
  loop: start=0, step=1, limit=10
  $region2: #{gpt2_forward.12} parent=0 // loop_pre_header
    _
  $region3: #{gpt2_forward.12} parent=0 // loop_header
    %s9 = sphi 0, %s13
    %p10 = scmp.ge.s32.totalorder %s9, 10
    %s16 = sphi 0, %s35
    %s17 = sphi 0, %s31
    %s18 = sphi 0, %s27
    %s19 = sphi 0, %s16
    %s20 = sphi 0, %s17
    %s21 = sphi 0, %s18
    %s22 = sphi 0, %s19
    %s23 = sphi 0, %s20
    %s24 = sphi 0, %s21
    %s40 = sphi 0, %s42
    %s43 = sphi 0, %s40
    %s44 = sphi 0, %s43
    %s60 = sphi 0, %s44
    %s68 = sphi 0, %s70
    %s71 = sphi 0, %s68
    %s72 = sphi 0, %s71
    %s88 = sphi 0, %s72
    %s96 = sphi 0, %s98
    %s99 = sphi 0, %s96
    %s100 = sphi 0, %s99
    %s116 = sphi 0, %s100
    %s124 = sphi 0, %s126
    %s127 = sphi 0, %s124
    %s128 = sphi 0, %s127
    %s144 = sphi 0, %s128
  $region4: #{gpt2_forward.12} parent=0 // loop_header_branch
    %12 = sbr.rel (%p10) target = $region8
  $region5: #{gpt2_forward.12} parent=0 // loop_body
    %s14 = ssub.s32 %s9, 1
    %s15 = ssub.s32 %s9, 2
    %s25 = sadd.s32 1, %s18
    %p26 = scmp.ge.s32.totalorder %s25, 1
    %s27 = scalar_select %p26, 0, %s25
    %s28 = sadd.s32 1, %s17
    %s29 = scalar_select %p26, %s28, %s17
    %p30 = scmp.ge.s32.totalorder %s29, 1
    %s31 = scalar_select %p30, 0, %s29
    %s32 = sadd.s32 1, %s16
    %s33 = scalar_select %p30, %s32, %s16
    %p34 = scmp.ge.s32.totalorder %s33, 8
    %s35 = scalar_select %p34, 0, %s33
    %s36 = ssub.s32 %s16, %s35
    %s37 = ssub.s32 %s17, %s31
    %s38 = sor.u32 %s36, %s37
    %p39 = scmp.eq.s32.totalorder %s38, 0
    %s41 = sadd.s32 %s40, 1
    %s42 = scalar_select %p39, %s40, %s41
    %p45 = pneg %p39
    %p46 = scmp.eq.s32.totalorder %s9, 7
    %p47 = por %p45, %p46
    %p48 = scmp.ne.s32.totalorder %s40, %s43
    %p49 = scmp.eq.s32.totalorder %s9, 0
    %p50 = por %p48, %p49
    %p51 = scmp.ne.s32.totalorder %s40, %s43
    %p52 = scmp.eq.s32.totalorder %s14, 7
    %p53 = por %p51, %p52
    %p54 = scmp.ne.s32.totalorder %s43, %s44
    %p55 = scmp.eq.s32.totalorder %s14, 0
    %p56 = por %p54, %p55
    %p57 = scmp.ne.s32.totalorder %s43, %s44
    %p58 = scmp.eq.s32.totalorder %s15, 7
    %p59 = por %p57, %p58
    %p61 = scmp.ne.s32.totalorder %s44, %s60
    %p62 = scmp.eq.s32.totalorder %s15, 0
    %p63 = por %p61, %p62
    %s64 = ssub.s32 %s16, %s35
    %s65 = ssub.s32 %s18, %s27
    %s66 = sor.u32 %s64, %s65
    %p67 = scmp.eq.s32.totalorder %s66, 0
    %s69 = sadd.s32 %s68, 1
    %s70 = scalar_select %p67, %s68, %s69
    %p73 = pneg %p67
    %p74 = scmp.eq.s32.totalorder %s9, 7
    %p75 = por %p73, %p74
    %p76 = scmp.ne.s32.totalorder %s68, %s71
    %p77 = scmp.eq.s32.totalorder %s9, 0
    %p78 = por %p76, %p77
    %p79 = scmp.ne.s32.totalorder %s68, %s71
    %p80 = scmp.eq.s32.totalorder %s14, 7
    %p81 = por %p79, %p80
    %p82 = scmp.ne.s32.totalorder %s71, %s72
    %p83 = scmp.eq.s32.totalorder %s14, 0
    %p84 = por %p82, %p83
    %p85 = scmp.ne.s32.totalorder %s71, %s72
    %p86 = scmp.eq.s32.totalorder %s15, 7
    %p87 = por %p85, %p86
    %p89 = scmp.ne.s32.totalorder %s72, %s88
    %p90 = scmp.eq.s32.totalorder %s15, 0
    %p91 = por %p89, %p90
    %s92 = ssub.s32 %s16, %s35
    %s93 = ssub.s32 %s18, %s27
    %s94 = sor.u32 %s92, %s93
    %p95 = scmp.eq.s32.totalorder %s94, 0
    %s97 = sadd.s32 %s96, 1
    %s98 = scalar_select %p95, %s96, %s97
    %p101 = pneg %p95
    %p102 = scmp.eq.s32.totalorder %s9, 7
    %p103 = por %p101, %p102
    %p104 = scmp.ne.s32.totalorder %s96, %s99
    %p105 = scmp.eq.s32.totalorder %s9, 0
    %p106 = por %p104, %p105
    %p107 = scmp.ne.s32.totalorder %s96, %s99
    %p108 = scmp.eq.s32.totalorder %s14, 7
    %p109 = por %p107, %p108
    %p110 = scmp.ne.s32.totalorder %s99, %s100
    %p111 = scmp.eq.s32.totalorder %s14, 0
    %p112 = por %p110, %p111
    %p113 = scmp.ne.s32.totalorder %s99, %s100
    %p114 = scmp.eq.s32.totalorder %s15, 7
    %p115 = por %p113, %p114
    %p117 = scmp.ne.s32.totalorder %s100, %s116
    %p118 = scmp.eq.s32.totalorder %s15, 0
    %p119 = por %p117, %p118
    %s120 = ssub.s32 %s16, %s35
    %s121 = ssub.s32 %s17, %s31
    %s122 = sor.u32 %s120, %s121
    %p123 = scmp.eq.s32.totalorder %s122, 0
    %s125 = sadd.s32 %s124, 1
    %s126 = scalar_select %p123, %s124, %s125
    %p129 = pneg %p123
    %p130 = scmp.eq.s32.totalorder %s9, 7
    %p131 = por %p129, %p130
    %p132 = scmp.ne.s32.totalorder %s124, %s127
    %p133 = scmp.eq.s32.totalorder %s9, 0
    %p134 = por %p132, %p133
    %p135 = scmp.ne.s32.totalorder %s124, %s127
    %p136 = scmp.eq.s32.totalorder %s14, 7
    %p137 = por %p135, %p136
    %p138 = scmp.ne.s32.totalorder %s127, %s128
    %p139 = scmp.eq.s32.totalorder %s14, 0
    %p140 = por %p138, %p139
    %p141 = scmp.ne.s32.totalorder %s127, %s128
    %p142 = scmp.eq.s32.totalorder %s15, 7
    %p143 = por %p141, %p142
    %p145 = scmp.ne.s32.totalorder %s128, %s144
    %p146 = scmp.eq.s32.totalorder %s15, 0
    %p147 = por %p145, %p146
    %p148 = scmp.le.s32.totalorder 1, %s9
    %p149 = scmp.lt.s32.totalorder %s9, 9
    %p150 = pnand %p148, %p149
    %p151 = pneg %p150
    // Predicated region
    $region9: #{gpt2_forward.12} parent=5 // pred_check
      _
    $region10: #{gpt2_forward.12} parent=5 // pred_check_branch
      %153 = sbr.rel (%p150) target = $region12
    $region11: #{gpt2_forward.12} parent=5 // pred_region
      %s154 = ssub.s32 %s9, 1
    $region12: #{gpt2_forward.12} parent=5 // pred_fallthru
      _
    %p155 = scmp.lt.s32.totalorder %s9, 8
    // Predicated region
    $region13: #{gpt2_forward.12} parent=5 // pred_check
      %p156 = pneg %p155
    $region14: #{gpt2_forward.12} parent=5 // pred_check_branch
      %158 = sbr.rel (%p156) target = $region16
    $region15: #{gpt2_forward.12} parent=5 // pred_region
      // Predicated region
      $region17: #{gpt2_forward.12} parent=15 // pred_check
        %p159 = pneg %p50
      $region18: #{gpt2_forward.12} parent=15 // pred_check_branch
        %161 = sbr.rel (%p159) target = $region20
      $region19: #{gpt2_forward.12} parent=15 // pred_region
        %p162 = scmp.lt.s32.totalorder %s16, 7
        %s163 = scalar_select %p162, %s16, 7
        %p164 = scmp.lt.s32.totalorder %s17, 0
        %s165 = scalar_select %p164, %s17, 0
        %s166 = sadd.s32 %s165, %s163
        %s167 = smul.addr %s166, 4
        %s168 = scalar_lea.vmem %s0, %s167
      $region20: #{gpt2_forward.12} parent=15 // pred_fallthru
        _
      // Predicated region
      $region21: #{gpt2_forward.12} parent=15 // pred_check
        %p169 = pneg %p78
      $region22: #{gpt2_forward.12} parent=15 // pred_check_branch
        %171 = sbr.rel (%p169) target = $region24
      $region23: #{gpt2_forward.12} parent=15 // pred_region
        %p172 = scmp.lt.s32.totalorder %s16, 7
        %s173 = scalar_select %p172, %s16, 7
        %p174 = scmp.lt.s32.totalorder %s18, 0
        %s175 = scalar_select %p174, %s18, 0
        %s176 = sadd.s32 %s175, %s173
        %s177 = smul.addr %s176, 4
        %s178 = scalar_lea.vmem %s1, %s177
      $region24: #{gpt2_forward.12} parent=15 // pred_fallthru
        _
      // Predicated region
      $region25: #{gpt2_forward.12} parent=15 // pred_check
        %p179 = pneg %p106
      $region26: #{gpt2_forward.12} parent=15 // pred_check_branch
        %181 = sbr.rel (%p179) target = $region28
      $region27: #{gpt2_forward.12} parent=15 // pred_region
        %p182 = scmp.lt.s32.totalorder %s16, 7
        %s183 = scalar_select %p182, %s16, 7
        %p184 = scmp.lt.s32.totalorder %s18, 0
        %s185 = scalar_select %p184, %s18, 0
        %s186 = sadd.s32 %s185, %s183
        %s187 = smul.addr %s186, 4
        %s188 = scalar_lea.vmem %s2, %s187
      $region28: #{gpt2_forward.12} parent=15 // pred_fallthru
        _
    $region16: #{gpt2_forward.12} parent=5 // pred_fallthru
      _
    %p189 = scmp.le.s32.totalorder 1, %s9
    %p190 = scmp.lt.s32.totalorder %s9, 9
    %p191 = pnand %p189, %p190
    %p192 = pneg %p191
    // Predicated region
    $region29: #{gpt2_forward.12} parent=5 // pred_check
      _
    $region30: #{gpt2_forward.12} parent=5 // pred_check_branch
      %194 = sbr.rel (%p191) target = $region32
    $region31: #{gpt2_forward.12} parent=5 // pred_region
      %s195 = ssub.s32 %s9, 1
      %p196 = scmp.lt.s32.totalorder %s19, 7
      %s197 = scalar_select %p196, %s19, 7
      %p198 = scmp.lt.s32.totalorder %s20, 0
      %s199 = scalar_select %p198, %s20, 0
      %s200 = sadd.s32 %s199, %s197
      %s201 = smul.addr %s200, 4
      %s202 = scalar_lea.vmem %s0, %s201
      %p203 = pneg %p56
      %p204 = pneg %p53
      %p205 = scmp.lt.s32.totalorder %s19, 7
      %s206 = scalar_select %p205, %s19, 7
      %p207 = scmp.lt.s32.totalorder %s21, 0
      %s208 = scalar_select %p207, %s21, 0
      %s209 = sadd.s32 %s208, %s206
      %s210 = smul.addr %s209, 4
      %s211 = scalar_lea.vmem %s1, %s210
      %p212 = pneg %p84
      %p213 = pneg %p81
      %p214 = scmp.lt.s32.totalorder %s19, 7
      %s215 = scalar_select %p214, %s19, 7
      %p216 = scmp.lt.s32.totalorder %s21, 0
      %s217 = scalar_select %p216, %s21, 0
      %s218 = sadd.s32 %s217, %s215
      %s219 = smul.addr %s218, 4
      %s220 = scalar_lea.vmem %s2, %s219
      %p221 = pneg %p112
      %p222 = pneg %p109
      %p223 = pneg %p140
      %p224 = pneg %p137
      %p225 = scmp.lt.s32.totalorder %s19, 7
      %s226 = scalar_select %p225, %s19, 7
      %p227 = scmp.lt.s32.totalorder %s20, 0
      %s228 = scalar_select %p227, %s20, 0
      %s229 = sadd.s32 %s228, %s226
      %s230 = smul.addr %s229, 4
      %s231 = scalar_lea.vmem %s3, %s230
      %p232 = scmp.lt.s32.totalorder %s19, 7
      %s233 = scalar_select %p232, %s19, 7
      %p234 = scmp.lt.s32.totalorder %s20, 0
      %s235 = scalar_select %p234, %s20, 0
      %s236 = sadd.s32 %s235, %s233
      %s237 = smul.addr %s236, 4
      %s238 = scalar_lea.vmem %s0, %s237
      %p239 = scmp.lt.s32.totalorder %s19, 7
      %s240 = scalar_select %p239, %s19, 7
      %p241 = scmp.lt.s32.totalorder %s21, 0
      %s242 = scalar_select %p241, %s21, 0
      %s243 = sadd.s32 %s242, %s240
      %s244 = smul.addr %s243, 4
      %s245 = scalar_lea.vmem %s1, %s244
      %p246 = scmp.lt.s32.totalorder %s19, 7
      %s247 = scalar_select %p246, %s19, 7
      %p248 = scmp.lt.s32.totalorder %s21, 0
      %s249 = scalar_select %p248, %s21, 0
      %s250 = sadd.s32 %s249, %s247
      %s251 = smul.addr %s250, 4
      %s252 = scalar_lea.vmem %s2, %s251
      %p253 = scmp.lt.s32.totalorder %s19, 7
      %s254 = scalar_select %p253, %s19, 7
      %p255 = scmp.lt.s32.totalorder %s20, 0
      %s256 = scalar_select %p255, %s20, 0
      %s257 = sadd.s32 %s256, %s254
      %s258 = smul.addr %s257, 4
      %s259 = scalar_lea.vmem %s3, %s258
      %p261 = scmp.eq.s32.totalorder %s21, 0
      // Predicated region
      $region33: #{gpt2_forward.12} parent=31 // pred_check
        %p262 = pneg %p261
      $region34: #{gpt2_forward.12} parent=31 // pred_check_branch
        %264 = sbr.rel (%p262) target = $region36
      $region35: #{gpt2_forward.12} parent=31 // pred_region
        %vm265 = vcmask 7168
        %266 = vst.msk [vmem:[#allocation2] sm:$0xff] %vm265, -inf
        %267 = vst.msk [vmem:[#allocation3] sm:$0xff] %vm265, 0.0
        %vm268 = vcmask 130048
        %269 = vst.msk [vmem:[#allocation4] sm:$0xff] %vm268, 0.0
      $region36: #{gpt2_forward.12} parent=31 // pred_fallthru
        _
      %v270 = vld [vmem:[%s238] sm:$0xf]
      %v271 = vld [vmem:[%s245] sm:$0xf]
      %vm272 = vcmask 130048
      %v274 = vsel %vm272, %v270, 0
      %v277 = vsel %vm272, %v271, 0
      %279 = vmatpush.bf16.xpose.msra.mxu0 0
      %280 = vmatpush.bf16.xpose.msra.mxu0 0
      %281 = vmatpush.bf16.xpose.msra.mxu0 0
      %282 = vmatpush.bf16.xpose.msra.mxu0 0
      %283 = vmatpush.bf16.xpose.msra.mxu0 0
      %284 = vmatpush.bf16.xpose.msra.mxu0 0
      %285 = vmatpush.bf16.xpose.msra.mxu0 0
      %286 = vmatpush.bf16.xpose.msra.mxu0 %v277
      %287 = vmatmul.bf16.gmra.mxu0 %v274
      %v288 = vpop.f32.mrf.mxu0
      %v289 = vadd.f32 0.0, %v288
      %v290 = vpop.f32.mrf.mxu0
      %291 = vdwg.mxu0
      %v292 = vmul.f32 %v289, 0.125
      %v293 = vld [vmem:[#allocation2] sm:$0xff]
      %vm294 = vcmask 64512
      %v295 = vsel %vm294, %v292, -inf
      %296 = vmax.xlane.f32.xlu0 %v295
      %v297 = vpop.xlane.xlu0 %296
      %v298 = vmax.f32 %v293, %v297
      %v299 = vsub.f32 %v293, %v298
      %v300 = vmul.f32 %v299, 1.442695
      %v301 = vpow.pop %v300
      %303 = vset.pattern.permute.xlu0 0
      %304 = vperm.xlu0 %303, %v298
      %v305 = vpop.permute.xlu0 %304
      %v307 = vsub.f32 %v292, %v305
      %v308 = vmul.f32 %v307, 1.442695
      %v309 = vpow.pop %v308
      %v310 = vld [vmem:[#allocation3] sm:$0xff]
      %v311 = vmul.f32 %v301, %v310
      %v312 = vsel %vm294, %v309, 0.0
      %313 = vadd.xlane.f32.xlu0 %v312
      %v314 = vpop.xlane.xlu0 %313
      %v315 = vadd.f32 %v311, %v314
      %vm316 = vcmask 7168
      %317 = vst.msk [vmem:[#allocation3] sm:$0xff] %vm316, %v315
      %v318 = vld [vmem:[#allocation4] sm:$0xff]
      %320 = vset.pattern.permute.xlu0 0
      %321 = vperm.xlu0 %320, %v301
      %v322 = vpop.permute.xlu0 %321
      %v324 = vmul.f32 %v322, %v318
      %v325 = vpack.c.bf16 %v309, %v309
      %v326 = vld [vmem:[%s252] sm:$0xf]
      %v328 = vsel %vm294, %v325, 0
      %vm330 = vcmask 1043456
      %v332 = vsel %vm330, %v326, 0
      %334 = vmatpush.bf16.msra.mxu0 0
      %335 = vmatpush.bf16.msra.mxu0 0
      %336 = vmatpush.bf16.msra.mxu0 0
      %337 = vmatpush.bf16.msra.mxu0 0
      %338 = vmatpush.bf16.msra.mxu0 0
      %339 = vmatpush.bf16.msra.mxu0 0
      %340 = vmatpush.bf16.msra.mxu0 0
      %341 = vmatpush.bf16.msra.mxu0 %v332
      %342 = vmatmul.bf16.gmra.mxu0 %v328
      %v343 = vpop.f32.mrf.mxu0
      %v344 = vadd.f32 0.0, %v343
      %v345 = vpop.f32.mrf.mxu0
      %346 = vdwg.mxu0
      %v347 = vadd.f32 %v324, %v344
      %348 = vst.msk [vmem:[#allocation4] sm:$0xff] %vm272, %v347
      %349 = vst.msk [vmem:[#allocation2] sm:$0xff] %vm316, %v298
      // Predicated region
      $region37: #{gpt2_forward.12} parent=31 // pred_check
        %p350 = pneg %p261
      $region38: #{gpt2_forward.12} parent=31 // pred_check_branch
        %352 = sbr.rel (%p350) target = $region40
      $region39: #{gpt2_forward.12} parent=31 // pred_region
        %v353 = vld [vmem:[#allocation4] sm:$0xff]
        %v354 = vld [vmem:[#allocation3] sm:$0xff]
        %356 = vset.pattern.permute.xlu0 0
        %357 = vperm.xlu0 %356, %v354
        %v358 = vpop.permute.xlu0 %357
        %v360 = vrcp.pop %v358
        %v361 = vmul.f32 %v358, %v360
        %v362 = vsub.f32 1.0, %v361
        %v363 = vmul.f32 %v360, %v362
        %v364 = vadd.f32 %v360, %v363
        %vm365 = vweird.f32 %v358
        %vm366 = vweird.f32 %v360
        %vm367 = vmor %vm365, %vm366
        %v368 = vsel %vm367, %v360, %v364
        %v369 = vand.u32 2147483647, %v358
        %vm370 = vcmp.eq.f32.partialorder %v369, 8.507059e+37
        %v371 = vand.u32 %v358, 2147483648
        %v372 = vor.u32 1.1754944e-38, %v371
        %v373 = vsel %vm370, %v372, %v368
        %v374 = vmul.f32 %v353, %v373
        %v375 = vpack.c.bf16 %v374, %v374
        %vm376 = vcmask 125952
        %377 = vst.msk [vmem:[%s259] sm:$0xf] %vm376, %v375
      $region40: #{gpt2_forward.12} parent=31 // pred_fallthru
        _
      %p378 = scmp.lt.s32.totalorder %s19, 7
      %s379 = scalar_select %p378, %s19, 7
      %p380 = scmp.lt.s32.totalorder %s20, 0
      %s381 = scalar_select %p380, %s20, 0
      %s382 = sadd.s32 %s381, %s379
      %s383 = smul.addr %s382, 4
      %s384 = scalar_lea.vmem %s3, %s383
      // Predicated region
      $region41: #{gpt2_forward.12} parent=31 // pred_check
        %p385 = pneg %p137
      $region42: #{gpt2_forward.12} parent=31 // pred_check_branch
        %387 = sbr.rel (%p385) target = $region44
      $region43: #{gpt2_forward.12} parent=31 // pred_region
        _
      $region44: #{gpt2_forward.12} parent=31 // pred_fallthru
        _
    $region32: #{gpt2_forward.12} parent=5 // pred_fallthru
      _
    %p388 = scmp.le.s32.totalorder 2, %s9
    // Predicated region
    $region45: #{gpt2_forward.12} parent=5 // pred_check
      %p389 = pneg %p388
    $region46: #{gpt2_forward.12} parent=5 // pred_check_branch
      %391 = sbr.rel (%p389) target = $region48
    $region47: #{gpt2_forward.12} parent=5 // pred_region
      %s392 = ssub.s32 %s9, 2
      // Predicated region
      $region49: #{gpt2_forward.12} parent=47 // pred_check
        %p393 = pneg %p143
      $region50: #{gpt2_forward.12} parent=47 // pred_check_branch
        %395 = sbr.rel (%p393) target = $region52
      $region51: #{gpt2_forward.12} parent=47 // pred_region
        %p396 = scmp.lt.s32.totalorder %s22, 7
        %s397 = scalar_select %p396, %s22, 7
        %p398 = scmp.lt.s32.totalorder %s23, 0
        %s399 = scalar_select %p398, %s23, 0
        %s400 = sadd.s32 %s399, %s397
        %s401 = smul.addr %s400, 4
        %s402 = scalar_lea.vmem %s3, %s401
      $region52: #{gpt2_forward.12} parent=47 // pred_fallthru
        _
    $region48: #{gpt2_forward.12} parent=5 // pred_fallthru
      _
  $region6: #{gpt2_forward.12} parent=0 // loop_footer
    %s13 = sadd.s32 1, %s9
  $region7: #{gpt2_forward.12} parent=0 // loop_footer_branch
    %8 = sbr.rel target = $region3
  $region8: #{gpt2_forward.12} parent=0 // loop_exit
    _

// kernel: gpt2_forward.14
$region0: #{gpt2_forward.14}
  #allocation0 [shape = 'u32[]', space=smem, size = 0x4, offset = 0x4, fixed_abs, tag = 'smem constant byte address 0x4 - core index']
  #allocation1 [shape = 'u32[72,128]{1,0:T(1,128)}', space=vmem, size = 0x9000, scoped, tag = 'internal scratch']
  #allocation2 [shape = 'bf16[16,64]{1,0:T(8,128)(2,1)}', space=vmem, size = 0x1000, scoped, tag = 'scratch operand']
  %s0 = inlined_call_operand.vmem [shape: f32[16,64], index: 0, kind: input, shape index: {}]
  %s1 = inlined_call_operand.vmem [shape: bf16[64,256], index: 1, kind: input, shape index: {}]
  %s2 = inlined_call_operand.vmem [shape: f32[1,256], index: 2, kind: input, shape index: {}]
  %s3 = inlined_call_operand.vmem [shape: f32[1,64], index: 3, kind: input, shape index: {}]
  %s4 = inlined_call_operand.vmem [shape: f32[1,64], index: 4, kind: input, shape index: {}]
  %s5 = inlined_call_operand.vmem [shape: bf16[16,256], index: 5, kind: output, shape index: {}]
  %s6 = sld [smem:[#allocation0]]
  $region34: #{gpt2_forward.14} parent=0
    _
  %s8 = ssub.s32 1, %s6
  %s9 = scalar_select 0, %s8, %s6
  // Predicated region
  $region2: #{gpt2_forward.14} parent=0 // pred_check
    _
  $region3: #{gpt2_forward.14} parent=0 // pred_check_branch
    %11 = sbr.rel (0) target = $region5
  $region4: #{gpt2_forward.14} parent=0 // pred_region
    _
  $region5: #{gpt2_forward.14} parent=0 // pred_fallthru
    _
  // Predicated region
  $region6: #{gpt2_forward.14} parent=0 // pred_check
    _
  $region7: #{gpt2_forward.14} parent=0 // pred_check_branch
    %13 = sbr.rel (0) target = $region9
  $region8: #{gpt2_forward.14} parent=0 // pred_region
    _
  $region9: #{gpt2_forward.14} parent=0 // pred_fallthru
    _
  // Predicated region
  $region10: #{gpt2_forward.14} parent=0 // pred_check
    _
  $region11: #{gpt2_forward.14} parent=0 // pred_check_branch
    %15 = sbr.rel (0) target = $region13
  $region12: #{gpt2_forward.14} parent=0 // pred_region
    _
  $region13: #{gpt2_forward.14} parent=0 // pred_fallthru
    _
  // Predicated region
  $region14: #{gpt2_forward.14} parent=0 // pred_check
    _
  $region15: #{gpt2_forward.14} parent=0 // pred_check_branch
    %17 = sbr.rel (0) target = $region17
  $region16: #{gpt2_forward.14} parent=0 // pred_region
    _
  $region17: #{gpt2_forward.14} parent=0 // pred_fallthru
    _
  // Predicated region
  $region18: #{gpt2_forward.14} parent=0 // pred_check
    _
  $region19: #{gpt2_forward.14} parent=0 // pred_check_branch
    %19 = sbr.rel (0) target = $region21
  $region20: #{gpt2_forward.14} parent=0 // pred_region
    _
  $region21: #{gpt2_forward.14} parent=0 // pred_fallthru
    _
  %p21 = scmp.eq.s32.totalorder 0, 0
  // Predicated region
  $region22: #{gpt2_forward.14} parent=0 // pred_check
    %p22 = pneg %p21
  $region23: #{gpt2_forward.14} parent=0 // pred_check_branch
    %24 = sbr.rel (%p22) target = $region25
  $region24: #{gpt2_forward.14} parent=0 // pred_region
    %v25 = vld [vmem:[%s0] sm:$0xff]
    %v26 = vld [vmem:[%s0 + $0x8] sm:$0xff]
    %vm27 = vcmask 523264
    %v28 = vsel %vm27, %v25, 0.0
    %29 = vadd.xlane.f32.xlu0 %v28
    %v30 = vpop.xlane.xlu0 %29
    %v31 = vsel %vm27, %v26, 0.0
    %32 = vadd.xlane.f32.xlu0 %v31
    %v33 = vpop.xlane.xlu0 %32
    %v34 = vrcp.pop 64.0
    %v35 = vmul.f32 64.0, %v34
    %v36 = vsub.f32 1.0, %v35
    %v37 = vmul.f32 %v34, %v36
    %v38 = vadd.f32 %v34, %v37
    %vm39 = vweird.f32 %v34
    %v40 = vsel %vm39, %v34, %v38
    %v41 = vmul.f32 %v30, %v40
    %v42 = vmul.f32 %v33, %v40
    %v43 = vsub.f32 %v25, %v41
    %v44 = vsub.f32 %v26, %v42
    %v45 = vmul.f32 %v43, %v43
    %v46 = vmul.f32 %v44, %v44
    %v47 = vsel %vm27, %v45, 0.0
    %48 = vadd.xlane.f32.xlu0 %v47
    %v49 = vpop.xlane.xlu0 %48
    %v50 = vsel %vm27, %v46, 0.0
    %51 = vadd.xlane.f32.xlu0 %v50
    %v52 = vpop.xlane.xlu0 %51
    %v53 = vmul.f32 %v49, %v40
    %v54 = vmul.f32 %v52, %v40
    %v55 = vadd.f32 %v53, 1e-05
    %v56 = vadd.f32 %v54, 1e-05
    %v57 = vrsqrt.pop %v55
    %v58 = vmul.f32 %v57, %v55
    %v59 = vmul.f32 %v58, %v57
    %v60 = vmul.f32 0.5, %v59
    %v61 = vsub.f32 1.5, %v60
    %v62 = vmul.f32 %v57, %v61
    %vm63 = vweird.f32 %v55
    %vm64 = vweird.f32 %v57
    %vm65 = vmor %vm63, %vm64
    %v66 = vsel %vm65, %v57, %v62
    %v67 = vrsqrt.pop %v56
    %v68 = vmul.f32 %v67, %v56
    %v69 = vmul.f32 %v68, %v67
    %v70 = vmul.f32 0.5, %v69
    %v71 = vsub.f32 1.5, %v70
    %v72 = vmul.f32 %v67, %v71
    %vm73 = vweird.f32 %v56
    %vm74 = vweird.f32 %v67
    %vm75 = vmor %vm73, %vm74
    %v76 = vsel %vm75, %v67, %v72
    %v77 = vmul.f32 %v43, %v66
    %v78 = vmul.f32 %v44, %v76
    %v79 = vld [vmem:[%s3] sm:$0x1]
    %v81 = vperm.slane %v79, 0
    %v83 = vmul.f32 %v77, %v81
    %v84 = vmul.f32 %v78, %v81
    %v85 = vld [vmem:[%s4] sm:$0x1]
    %v87 = vperm.slane %v85, 0
    %v89 = vadd.f32 %v83, %v87
    %v90 = vadd.f32 %v84, %v87
    %v91 = vpack.c.bf16 %v89, %v89
    %v92 = vpack.c.bf16 %v90, %v90
    %vm93 = vcmask 519168
    %94 = vst.msk [vmem:[#allocation2] sm:$0xf] %vm93, %v91
    %95 = vst.msk [vmem:[#allocation2 + $0x4] sm:$0xf] %vm93, %v92
  $region25: #{gpt2_forward.14} parent=0 // pred_fallthru
    _
  %v96 = vld [vmem:[#allocation2] sm:$0xf]
  %v97 = vld [vmem:[#allocation2 + $0x4] sm:$0xf]
  %v98 = vld [vmem:[%s1] sm:$0xff]
  %v99 = vld [vmem:[%s1 + $0x8] sm:$0xff]
  %v100 = vld [vmem:[%s1 + $0x10] sm:$0xff]
  %v101 = vld [vmem:[%s1 + $0x18] sm:$0xff]
  %v102 = vld [vmem:[%s1 + $0x20] sm:$0xff]
  %v103 = vld [vmem:[%s1 + $0x28] sm:$0xff]
  %v104 = vld [vmem:[%s1 + $0x30] sm:$0xff]
  %v105 = vld [vmem:[%s1 + $0x38] sm:$0xff]
  %v106 = vld [vmem:[%s2] sm:$0x3]
  %v108 = vperm.slane %v106, 0
  %v109 = vperm.slane %v106, 1
  %v114 = vunpack.c.l.b16 %v96
  %v115 = vunpack.c.l.b16 %v97
  %v116 = vpack.c.b16 %v115, %v114
  %v125 = vunpack.c.l.b16 %v98
  %v126 = vunpack.c.h.b16 %v98
  %v127 = vunpack.c.l.b16 %v99
  %v128 = vunpack.c.h.b16 %v99
  %v129 = vunpack.c.l.b16 %v100
  %v130 = vunpack.c.h.b16 %v100
  %v131 = vunpack.c.l.b16 %v101
  %v132 = vunpack.c.h.b16 %v101
  %v133 = vunpack.c.l.b16 %v102
  %v134 = vunpack.c.h.b16 %v102
  %v135 = vunpack.c.l.b16 %v103
  %v136 = vunpack.c.h.b16 %v103
  %v137 = vunpack.c.l.b16 %v104
  %v138 = vunpack.c.h.b16 %v104
  %v139 = vunpack.c.l.b16 %v105
  %v140 = vunpack.c.h.b16 %v105
  %v141 = vpack.c.b16 %v127, %v125
  %v142 = vpack.c.b16 %v128, %v126
  %v143 = vpack.c.b16 %v131, %v129
  %v144 = vpack.c.b16 %v132, %v130
  %v145 = vpack.c.b16 %v135, %v133
  %v146 = vpack.c.b16 %v136, %v134
  %v147 = vpack.c.b16 %v139, %v137
  %v148 = vpack.c.b16 %v140, %v138
  %vm157 = vcmask 523264
  %v159 = vsel %vm157, %v116, 0
  %161 = vmatpush.bf16.msra.mxu0 0
  %162 = vmatpush.bf16.msra.mxu0 0
  %163 = vmatpush.bf16.msra.mxu0 0
  %164 = vmatpush.bf16.msra.mxu0 0
  %165 = vmatpush.bf16.msra.mxu0 %v147
  %166 = vmatpush.bf16.msra.mxu0 %v145
  %167 = vmatpush.bf16.msra.mxu0 %v143
  %168 = vmatpush.bf16.msra.mxu0 %v141
  %169 = vmatmul.bf16.gmra.mxu0 %v159
  %v170 = vpop.f32.mrf.mxu0
  %v171 = vadd.f32 %v108, %v170
  %v172 = vpop.f32.mrf.mxu0
  %v173 = vadd.f32 %v108, %v172
  %174 = vdwg.mxu0
  %175 = vmatpush.bf16.msra.mxu0 0
  %176 = vmatpush.bf16.msra.mxu0 0
  %177 = vmatpush.bf16.msra.mxu0 0
  %178 = vmatpush.bf16.msra.mxu0 0
  %179 = vmatpush.bf16.msra.mxu0 %v148
  %180 = vmatpush.bf16.msra.mxu0 %v146
  %181 = vmatpush.bf16.msra.mxu0 %v144
  %182 = vmatpush.bf16.msra.mxu0 %v142
  %183 = vmatmul.bf16.gmra.mxu0 %v159
  %v184 = vpop.f32.mrf.mxu0
  %v185 = vadd.f32 %v109, %v184
  %v186 = vpop.f32.mrf.mxu0
  %v187 = vadd.f32 %v109, %v186
  %188 = vdwg.mxu0
  %v189 = vmul.f32 %v171, 0.5
  %v190 = vmul.f32 %v185, 0.5
  %v191 = vmul.f32 %v173, 0.5
  %v192 = vmul.f32 %v187, 0.5
  %v193 = vmul.f32 %v171, 0.70710677
  %v194 = vmul.f32 %v185, 0.70710677
  %v195 = vmul.f32 %v173, 0.70710677
  %v196 = vmul.f32 %v187, 0.70710677
  %v197 = vmul.f32 %v193, %v193
  %v198 = vmin.f32 16.0, %v197
  %v199 = vmul.f32 %v198, 2.1237322e-06
  %v200 = vadd.f32 %v199, 0.00028619796
  %v201 = vmul.f32 %v198, %v200
  %v202 = vadd.f32 %v201, 0.0036580483
  %v203 = vmul.f32 %v198, %v202
  %v204 = vadd.f32 %v203, 0.05243302
  %v205 = vmul.f32 %v198, %v204
  %v206 = vadd.f32 %v205, 0.18741608
  %v207 = vmul.f32 %v198, %v206
  %v208 = vadd.f32 %v207, 1.1283791
  %v209 = vmul.f32 %v193, %v208
  %v210 = vmul.f32 %v198, 3.8918573e-05
  %v211 = vadd.f32 %v210, 0.001143296
  %v212 = vmul.f32 %v198, %v211
  %v213 = vadd.f32 %v212, 0.014752088
  %v214 = vmul.f32 %v198, %v213
  %v215 = vadd.f32 %v214, 0.112945676
  %v216 = vmul.f32 %v198, %v215
  %v217 = vadd.f32 %v216, 0.4994258
  %v218 = vmul.f32 %v198, %v217
  %v219 = vadd.f32 %v218, 1.0
  %v220 = vrcp.pop %v219
  %v221 = vmul.f32 %v219, %v220
  %v222 = vsub.f32 1.0, %v221
  %v223 = vmul.f32 %v220, %v222
  %v224 = vadd.f32 %v220, %v223
  %vm225 = vweird.f32 %v219
  %vm226 = vweird.f32 %v220
  %vm227 = vmor %vm225, %vm226
  %v228 = vsel %vm227, %v220, %v224
  %v229 = vand.u32 2147483647, %v219
  %vm230 = vcmp.eq.f32.partialorder %v229, 8.507059e+37
  %v231 = vand.u32 %v219, 2147483648
  %v232 = vor.u32 1.1754944e-38, %v231
  %v233 = vsel %vm230, %v232, %v228
  %v234 = vmul.f32 %v209, %v233
  %v235 = vmin.f32 %v234, 1.0
  %v236 = vmax.f32 %v235, -1.0
  %v237 = vmul.f32 %v194, %v194
  %v238 = vmin.f32 16.0, %v237
  %v239 = vmul.f32 %v238, 2.1237322e-06
  %v240 = vadd.f32 %v239, 0.00028619796
  %v241 = vmul.f32 %v238, %v240
  %v242 = vadd.f32 %v241, 0.0036580483
  %v243 = vmul.f32 %v238, %v242
  %v244 = vadd.f32 %v243, 0.05243302
  %v245 = vmul.f32 %v238, %v244
  %v246 = vadd.f32 %v245, 0.18741608
  %v247 = vmul.f32 %v238, %v246
  %v248 = vadd.f32 %v247, 1.1283791
  %v249 = vmul.f32 %v194, %v248
  %v250 = vmul.f32 %v238, 3.8918573e-05
  %v251 = vadd.f32 %v250, 0.001143296
  %v252 = vmul.f32 %v238, %v251
  %v253 = vadd.f32 %v252, 0.014752088
  %v254 = vmul.f32 %v238, %v253
  %v255 = vadd.f32 %v254, 0.112945676
  %v256 = vmul.f32 %v238, %v255
  %v257 = vadd.f32 %v256, 0.4994258
  %v258 = vmul.f32 %v238, %v257
  %v259 = vadd.f32 %v258, 1.0
  %v260 = vrcp.pop %v259
  %v261 = vmul.f32 %v259, %v260
  %v262 = vsub.f32 1.0, %v261
  %v263 = vmul.f32 %v260, %v262
  %v264 = vadd.f32 %v260, %v263
  %vm265 = vweird.f32 %v259
  %vm266 = vweird.f32 %v260
  %vm267 = vmor %vm265, %vm266
  %v268 = vsel %vm267, %v260, %v264
  %v269 = vand.u32 2147483647, %v259
  %vm270 = vcmp.eq.f32.partialorder %v269, 8.507059e+37
  %v271 = vand.u32 %v259, 2147483648
  %v272 = vor.u32 1.1754944e-38, %v271
  %v273 = vsel %vm270, %v272, %v268
  %v274 = vmul.f32 %v249, %v273
  %v275 = vmin.f32 %v274, 1.0
  %v276 = vmax.f32 %v275, -1.0
  %v277 = vmul.f32 %v195, %v195
  %v278 = vmin.f32 16.0, %v277
  %v279 = vmul.f32 %v278, 2.1237322e-06
  %v280 = vadd.f32 %v279, 0.00028619796
  %v281 = vmul.f32 %v278, %v280
  %v282 = vadd.f32 %v281, 0.0036580483
  %v283 = vmul.f32 %v278, %v282
  %v284 = vadd.f32 %v283, 0.05243302
  %v285 = vmul.f32 %v278, %v284
  %v286 = vadd.f32 %v285, 0.18741608
  %v287 = vmul.f32 %v278, %v286
  %v288 = vadd.f32 %v287, 1.1283791
  %v289 = vmul.f32 %v195, %v288
  %v290 = vmul.f32 %v278, 3.8918573e-05
  %v291 = vadd.f32 %v290, 0.001143296
  %v292 = vmul.f32 %v278, %v291
  %v293 = vadd.f32 %v292, 0.014752088
  %v294 = vmul.f32 %v278, %v293
  %v295 = vadd.f32 %v294, 0.112945676
  %v296 = vmul.f32 %v278, %v295
  %v297 = vadd.f32 %v296, 0.4994258
  %v298 = vmul.f32 %v278, %v297
  %v299 = vadd.f32 %v298, 1.0
  %v300 = vrcp.pop %v299
  %v301 = vmul.f32 %v299, %v300
  %v302 = vsub.f32 1.0, %v301
  %v303 = vmul.f32 %v300, %v302
  %v304 = vadd.f32 %v300, %v303
  %vm305 = vweird.f32 %v299
  %vm306 = vweird.f32 %v300
  %vm307 = vmor %vm305, %vm306
  %v308 = vsel %vm307, %v300, %v304
  %v309 = vand.u32 2147483647, %v299
  %vm310 = vcmp.eq.f32.partialorder %v309, 8.507059e+37
  %v311 = vand.u32 %v299, 2147483648
  %v312 = vor.u32 1.1754944e-38, %v311
  %v313 = vsel %vm310, %v312, %v308
  %v314 = vmul.f32 %v289, %v313
  %v315 = vmin.f32 %v314, 1.0
  %v316 = vmax.f32 %v315, -1.0
  %v317 = vmul.f32 %v196, %v196
  %v318 = vmin.f32 16.0, %v317
  %v319 = vmul.f32 %v318, 2.1237322e-06
  %v320 = vadd.f32 %v319, 0.00028619796
  %v321 = vmul.f32 %v318, %v320
  %v322 = vadd.f32 %v321, 0.0036580483
  %v323 = vmul.f32 %v318, %v322
  %v324 = vadd.f32 %v323, 0.05243302
  %v325 = vmul.f32 %v318, %v324
  %v326 = vadd.f32 %v325, 0.18741608
  %v327 = vmul.f32 %v318, %v326
  %v328 = vadd.f32 %v327, 1.1283791
  %v329 = vmul.f32 %v196, %v328
  %v330 = vmul.f32 %v318, 3.8918573e-05
  %v331 = vadd.f32 %v330, 0.001143296
  %v332 = vmul.f32 %v318, %v331
  %v333 = vadd.f32 %v332, 0.014752088
  %v334 = vmul.f32 %v318, %v333
  %v335 = vadd.f32 %v334, 0.112945676
  %v336 = vmul.f32 %v318, %v335
  %v337 = vadd.f32 %v336, 0.4994258
  %v338 = vmul.f32 %v318, %v337
  %v339 = vadd.f32 %v338, 1.0
  %v340 = vrcp.pop %v339
  %v341 = vmul.f32 %v339, %v340
  %v342 = vsub.f32 1.0, %v341
  %v343 = vmul.f32 %v340, %v342
  %v344 = vadd.f32 %v340, %v343
  %vm345 = vweird.f32 %v339
  %vm346 = vweird.f32 %v340
  %vm347 = vmor %vm345, %vm346
  %v348 = vsel %vm347, %v340, %v344
  %v349 = vand.u32 2147483647, %v339
  %vm350 = vcmp.eq.f32.partialorder %v349, 8.507059e+37
  %v351 = vand.u32 %v339, 2147483648
  %v352 = vor.u32 1.1754944e-38, %v351
  %v353 = vsel %vm350, %v352, %v348
  %v354 = vmul.f32 %v329, %v353
  %v355 = vmin.f32 %v354, 1.0
  %v356 = vmax.f32 %v355, -1.0
  %v357 = vadd.f32 %v236, 1.0
  %v358 = vadd.f32 %v276, 1.0
  %v359 = vadd.f32 %v316, 1.0
  %v360 = vadd.f32 %v356, 1.0
  %v361 = vmul.f32 %v189, %v357
  %v362 = vmul.f32 %v190, %v358
  %v363 = vmul.f32 %v191, %v359
  %v364 = vmul.f32 %v192, %v360
  %v365 = vpack.c.bf16 %v362, %v361
  %v366 = vpack.c.bf16 %v364, %v363
  %367 = vst [vmem:[%s5] sm:$0xff] %v365
  %368 = vst [vmem:[%s5 + $0x8] sm:$0xff] %v366
  // Predicated region
  $region26: #{gpt2_forward.14} parent=0 // pred_check
    _
  $region27: #{gpt2_forward.14} parent=0 // pred_check_branch
    %370 = sbr.rel (0) target = $region29
  $region28: #{gpt2_forward.14} parent=0 // pred_region
    _
  $region29: #{gpt2_forward.14} parent=0 // pred_fallthru
    _
  // Predicated region
  $region30: #{gpt2_forward.14} parent=0 // pred_check
    _
  $region31: #{gpt2_forward.14} parent=0 // pred_check_branch
    %372 = sbr.rel (0) target = $region33
  $region32: #{gpt2_forward.14} parent=0 // pred_region
    _
  $region33: #{gpt2_forward.14} parent=0 // pred_fallthru
    _

// kernel: gpt2_forward.15
$region0: #{gpt2_forward.15}
  #allocation0 [shape = 'u32[]', space=smem, size = 0x4, offset = 0x4, fixed_abs, tag = 'smem constant byte address 0x4 - core index']
  #allocation1 [shape = 'u32[72,128]{1,0:T(1,128)}', space=vmem, size = 0x9000, scoped, tag = 'internal scratch']
  %s0 = inlined_call_operand.vmem [shape: bf16[16,256], index: 0, kind: input, shape index: {}]
  %s1 = inlined_call_operand.vmem [shape: bf16[256,64], index: 1, kind: input, shape index: {}]
  %s2 = inlined_call_operand.vmem [shape: f32[1,64], index: 2, kind: input, shape index: {}]
  %s3 = inlined_call_operand.vmem [shape: f32[16,64], index: 3, kind: input, shape index: {}]
  %s4 = inlined_call_operand.vmem [shape: f32[16,64], index: 4, kind: output, shape index: {}]
  %s5 = sld [smem:[#allocation0]]
  $region26: #{gpt2_forward.15} parent=0
    _
  %s7 = ssub.s32 1, %s5
  %s8 = scalar_select 0, %s7, %s5
  // Predicated region
  $region2: #{gpt2_forward.15} parent=0 // pred_check
    _
  $region3: #{gpt2_forward.15} parent=0 // pred_check_branch
    %10 = sbr.rel (0) target = $region5
  $region4: #{gpt2_forward.15} parent=0 // pred_region
    _
  $region5: #{gpt2_forward.15} parent=0 // pred_fallthru
    _
  // Predicated region
  $region6: #{gpt2_forward.15} parent=0 // pred_check
    _
  $region7: #{gpt2_forward.15} parent=0 // pred_check_branch
    %12 = sbr.rel (0) target = $region9
  $region8: #{gpt2_forward.15} parent=0 // pred_region
    _
  $region9: #{gpt2_forward.15} parent=0 // pred_fallthru
    _
  // Predicated region
  $region10: #{gpt2_forward.15} parent=0 // pred_check
    _
  $region11: #{gpt2_forward.15} parent=0 // pred_check_branch
    %14 = sbr.rel (0) target = $region13
  $region12: #{gpt2_forward.15} parent=0 // pred_region
    _
  $region13: #{gpt2_forward.15} parent=0 // pred_fallthru
    _
  // Predicated region
  $region14: #{gpt2_forward.15} parent=0 // pred_check
    _
  $region15: #{gpt2_forward.15} parent=0 // pred_check_branch
    %16 = sbr.rel (0) target = $region17
  $region16: #{gpt2_forward.15} parent=0 // pred_region
    _
  $region17: #{gpt2_forward.15} parent=0 // pred_fallthru
    _
  %v17 = vld [vmem:[%s0] sm:$0xff]
  %v18 = vld [vmem:[%s0 + $0x8] sm:$0xff]
  %v19 = vld [vmem:[%s1] sm:$0xf]
  %v20 = vld [vmem:[%s1 + $0x4] sm:$0xf]
  %v21 = vld [vmem:[%s1 + $0x8] sm:$0xf]
  %v22 = vld [vmem:[%s1 + $0xc] sm:$0xf]
  %v23 = vld [vmem:[%s1 + $0x10] sm:$0xf]
  %v24 = vld [vmem:[%s1 + $0x14] sm:$0xf]
  %v25 = vld [vmem:[%s1 + $0x18] sm:$0xf]
  %v26 = vld [vmem:[%s1 + $0x1c] sm:$0xf]
  %v27 = vld [vmem:[%s1 + $0x20] sm:$0xf]
  %v28 = vld [vmem:[%s1 + $0x24] sm:$0xf]
  %v29 = vld [vmem:[%s1 + $0x28] sm:$0xf]
  %v30 = vld [vmem:[%s1 + $0x2c] sm:$0xf]
  %v31 = vld [vmem:[%s1 + $0x30] sm:$0xf]
  %v32 = vld [vmem:[%s1 + $0x34] sm:$0xf]
  %v33 = vld [vmem:[%s1 + $0x38] sm:$0xf]
  %v34 = vld [vmem:[%s1 + $0x3c] sm:$0xf]
  %v35 = vld [vmem:[%s1 + $0x40] sm:$0xf]
  %v36 = vld [vmem:[%s1 + $0x44] sm:$0xf]
  %v37 = vld [vmem:[%s1 + $0x48] sm:$0xf]
  %v38 = vld [vmem:[%s1 + $0x4c] sm:$0xf]
  %v39 = vld [vmem:[%s1 + $0x50] sm:$0xf]
  %v40 = vld [vmem:[%s1 + $0x54] sm:$0xf]
  %v41 = vld [vmem:[%s1 + $0x58] sm:$0xf]
  %v42 = vld [vmem:[%s1 + $0x5c] sm:$0xf]
  %v43 = vld [vmem:[%s1 + $0x60] sm:$0xf]
  %v44 = vld [vmem:[%s1 + $0x64] sm:$0xf]
  %v45 = vld [vmem:[%s1 + $0x68] sm:$0xf]
  %v46 = vld [vmem:[%s1 + $0x6c] sm:$0xf]
  %v47 = vld [vmem:[%s1 + $0x70] sm:$0xf]
  %v48 = vld [vmem:[%s1 + $0x74] sm:$0xf]
  %v49 = vld [vmem:[%s1 + $0x78] sm:$0xf]
  %v50 = vld [vmem:[%s1 + $0x7c] sm:$0xf]
  %v51 = vld [vmem:[%s2] sm:$0x1]
  %v53 = vperm.slane %v51, 0
  %v57 = vunpack.c.l.b16 %v17
  %v58 = vunpack.c.h.b16 %v17
  %v59 = vunpack.c.l.b16 %v18
  %v60 = vunpack.c.h.b16 %v18
  %v61 = vpack.c.b16 %v59, %v57
  %v62 = vpack.c.b16 %v60, %v58
  %v97 = vunpack.c.l.b16 %v19
  %v98 = vunpack.c.l.b16 %v20
  %v99 = vunpack.c.l.b16 %v21
  %v100 = vunpack.c.l.b16 %v22
  %v101 = vunpack.c.l.b16 %v23
  %v102 = vunpack.c.l.b16 %v24
  %v103 = vunpack.c.l.b16 %v25
  %v104 = vunpack.c.l.b16 %v26
  %v105 = vunpack.c.l.b16 %v27
  %v106 = vunpack.c.l.b16 %v28
  %v107 = vunpack.c.l.b16 %v29
  %v108 = vunpack.c.l.b16 %v30
  %v109 = vunpack.c.l.b16 %v31
  %v110 = vunpack.c.l.b16 %v32
  %v111 = vunpack.c.l.b16 %v33
  %v112 = vunpack.c.l.b16 %v34
  %v113 = vunpack.c.l.b16 %v35
  %v114 = vunpack.c.l.b16 %v36
  %v115 = vunpack.c.l.b16 %v37
  %v116 = vunpack.c.l.b16 %v38
  %v117 = vunpack.c.l.b16 %v39
  %v118 = vunpack.c.l.b16 %v40
  %v119 = vunpack.c.l.b16 %v41
  %v120 = vunpack.c.l.b16 %v42
  %v121 = vunpack.c.l.b16 %v43
  %v122 = vunpack.c.l.b16 %v44
  %v123 = vunpack.c.l.b16 %v45
  %v124 = vunpack.c.l.b16 %v46
  %v125 = vunpack.c.l.b16 %v47
  %v126 = vunpack.c.l.b16 %v48
  %v127 = vunpack.c.l.b16 %v49
  %v128 = vunpack.c.l.b16 %v50
  %v129 = vpack.c.b16 %v98, %v97
  %v130 = vpack.c.b16 %v100, %v99
  %v131 = vpack.c.b16 %v102, %v101
  %v132 = vpack.c.b16 %v104, %v103
  %v133 = vpack.c.b16 %v106, %v105
  %v134 = vpack.c.b16 %v108, %v107
  %v135 = vpack.c.b16 %v110, %v109
  %v136 = vpack.c.b16 %v112, %v111
  %v137 = vpack.c.b16 %v114, %v113
  %v138 = vpack.c.b16 %v116, %v115
  %v139 = vpack.c.b16 %v118, %v117
  %v140 = vpack.c.b16 %v120, %v119
  %v141 = vpack.c.b16 %v122, %v121
  %v142 = vpack.c.b16 %v124, %v123
  %v143 = vpack.c.b16 %v126, %v125
  %v144 = vpack.c.b16 %v128, %v127
  %161 = vmatpush.bf16.msra.mxu0 %v136
  %162 = vmatpush.bf16.msra.mxu0 %v135
  %163 = vmatpush.bf16.msra.mxu0 %v134
  %164 = vmatpush.bf16.msra.mxu0 %v133
  %165 = vmatpush.bf16.msra.mxu0 %v132
  %166 = vmatpush.bf16.msra.mxu0 %v131
  %167 = vmatpush.bf16.msra.mxu0 %v130
  %168 = vmatpush.bf16.msra.mxu0 %v129
  %169 = vmatmul.bf16.gmra.mxu0 %v61
  %v170 = vpop.f32.mrf.mxu0
  %v171 = vadd.f32 %v53, %v170
  %v172 = vpop.f32.mrf.mxu0
  %v173 = vadd.f32 %v53, %v172
  %174 = vdwg.mxu0
  %175 = vmatpush.bf16.msra.mxu0 %v144
  %176 = vmatpush.bf16.msra.mxu0 %v143
  %177 = vmatpush.bf16.msra.mxu0 %v142
  %178 = vmatpush.bf16.msra.mxu0 %v141
  %179 = vmatpush.bf16.msra.mxu0 %v140
  %180 = vmatpush.bf16.msra.mxu0 %v139
  %181 = vmatpush.bf16.msra.mxu0 %v138
  %182 = vmatpush.bf16.msra.mxu0 %v137
  %183 = vmatmul.bf16.gmra.mxu0 %v62
  %v184 = vpop.f32.mrf.mxu0
  %v185 = vadd.f32 %v171, %v184
  %v186 = vpop.f32.mrf.mxu0
  %v187 = vadd.f32 %v173, %v186
  %188 = vdwg.mxu0
  %v189 = vld [vmem:[%s3] sm:$0xff]
  %v190 = vld [vmem:[%s3 + $0x8] sm:$0xff]
  %v191 = vmul.f32 %v185, 0.9
  %v192 = vmul.f32 %v187, 0.9
  %v193 = vadd.f32 %v189, %v191
  %v194 = vadd.f32 %v190, %v192
  %vm195 = vcmask 523264
  %196 = vst.msk [vmem:[%s4] sm:$0xff] %vm195, %v193
  %197 = vst.msk [vmem:[%s4 + $0x8] sm:$0xff] %vm195, %v194
  // Predicated region
  $region18: #{gpt2_forward.15} parent=0 // pred_check
    _
  $region19: #{gpt2_forward.15} parent=0 // pred_check_branch
    %199 = sbr.rel (0) target = $region21
  $region20: #{gpt2_forward.15} parent=0 // pred_region
    _
  $region21: #{gpt2_forward.15} parent=0 // pred_fallthru
    _
  // Predicated region
  $region22: #{gpt2_forward.15} parent=0 // pred_check
    _
  $region23: #{gpt2_forward.15} parent=0 // pred_check_branch
    %201 = sbr.rel (0) target = $region25
  $region24: #{gpt2_forward.15} parent=0 // pred_region
    _
  $region25: #{gpt2_forward.15} parent=0 // pred_fallthru
    _

// kernel: gpt2_forward.21
$region0: #{gpt2_forward.21}
  #allocation0 [shape = 'u32[]', space=smem, size = 0x4, offset = 0x4, fixed_abs, tag = 'smem constant byte address 0x4 - core index']
  #allocation1 [shape = 'u32[72,128]{1,0:T(1,128)}', space=vmem, size = 0x9000, scoped, tag = 'internal scratch']
  #allocation2 [shape = 'bf16[16,64]{1,0:T(8,128)(2,1)}', space=vmem, size = 0x1000, scoped, tag = 'scratch operand']
  %s0 = inlined_call_operand.vmem [shape: f32[16,64], index: 0, kind: input, shape index: {}]
  %s1 = inlined_call_operand.vmem [shape: f32[1,64], index: 1, kind: input, shape index: {}]
  %s2 = inlined_call_operand.vmem [shape: f32[1,64], index: 2, kind: input, shape index: {}]
  %s3 = inlined_call_operand.vmem [shape: bf16[512,64], index: 3, kind: input, shape index: {}]
  %s4 = inlined_call_operand.vmem [shape: f32[16,512], index: 4, kind: output, shape index: {}]
  %s5 = sld [smem:[#allocation0]]
  $region30: #{gpt2_forward.21} parent=0
    _
  %s7 = ssub.s32 1, %s5
  %s8 = scalar_select 0, %s7, %s5
  // Predicated region
  $region2: #{gpt2_forward.21} parent=0 // pred_check
    _
  $region3: #{gpt2_forward.21} parent=0 // pred_check_branch
    %10 = sbr.rel (0) target = $region5
  $region4: #{gpt2_forward.21} parent=0 // pred_region
    _
  $region5: #{gpt2_forward.21} parent=0 // pred_fallthru
    _
  // Predicated region
  $region6: #{gpt2_forward.21} parent=0 // pred_check
    _
  $region7: #{gpt2_forward.21} parent=0 // pred_check_branch
    %12 = sbr.rel (0) target = $region9
  $region8: #{gpt2_forward.21} parent=0 // pred_region
    _
  $region9: #{gpt2_forward.21} parent=0 // pred_fallthru
    _
  // Predicated region
  $region10: #{gpt2_forward.21} parent=0 // pred_check
    _
  $region11: #{gpt2_forward.21} parent=0 // pred_check_branch
    %14 = sbr.rel (0) target = $region13
  $region12: #{gpt2_forward.21} parent=0 // pred_region
    _
  $region13: #{gpt2_forward.21} parent=0 // pred_fallthru
    _
  // Predicated region
  $region14: #{gpt2_forward.21} parent=0 // pred_check
    _
  $region15: #{gpt2_forward.21} parent=0 // pred_check_branch
    %16 = sbr.rel (0) target = $region17
  $region16: #{gpt2_forward.21} parent=0 // pred_region
    _
  $region17: #{gpt2_forward.21} parent=0 // pred_fallthru
    _
  %p17 = scmp.eq.s32.totalorder 0, 0
  // Predicated region
  $region18: #{gpt2_forward.21} parent=0 // pred_check
    %p18 = pneg %p17
  $region19: #{gpt2_forward.21} parent=0 // pred_check_branch
    %20 = sbr.rel (%p18) target = $region21
  $region20: #{gpt2_forward.21} parent=0 // pred_region
    %v21 = vld [vmem:[%s0] sm:$0xff]
    %v22 = vld [vmem:[%s0 + $0x8] sm:$0xff]
    %vm23 = vcmask 523264
    %v24 = vsel %vm23, %v21, 0.0
    %25 = vadd.xlane.f32.xlu0 %v24
    %v26 = vpop.xlane.xlu0 %25
    %v27 = vsel %vm23, %v22, 0.0
    %28 = vadd.xlane.f32.xlu0 %v27
    %v29 = vpop.xlane.xlu0 %28
    %v30 = vrcp.pop 64.0
    %v31 = vmul.f32 64.0, %v30
    %v32 = vsub.f32 1.0, %v31
    %v33 = vmul.f32 %v30, %v32
    %v34 = vadd.f32 %v30, %v33
    %vm35 = vweird.f32 %v30
    %v36 = vsel %vm35, %v30, %v34
    %v37 = vmul.f32 %v26, %v36
    %v38 = vmul.f32 %v29, %v36
    %v39 = vsub.f32 %v21, %v37
    %v40 = vsub.f32 %v22, %v38
    %v41 = vmul.f32 %v39, %v39
    %v42 = vmul.f32 %v40, %v40
    %v43 = vsel %vm23, %v41, 0.0
    %44 = vadd.xlane.f32.xlu0 %v43
    %v45 = vpop.xlane.xlu0 %44
    %v46 = vsel %vm23, %v42, 0.0
    %47 = vadd.xlane.f32.xlu0 %v46
    %v48 = vpop.xlane.xlu0 %47
    %v49 = vmul.f32 %v45, %v36
    %v50 = vmul.f32 %v48, %v36
    %v51 = vadd.f32 %v49, 1e-05
    %v52 = vadd.f32 %v50, 1e-05
    %v53 = vrsqrt.pop %v51
    %v54 = vmul.f32 %v53, %v51
    %v55 = vmul.f32 %v54, %v53
    %v56 = vmul.f32 0.5, %v55
    %v57 = vsub.f32 1.5, %v56
    %v58 = vmul.f32 %v53, %v57
    %vm59 = vweird.f32 %v51
    %vm60 = vweird.f32 %v53
    %vm61 = vmor %vm59, %vm60
    %v62 = vsel %vm61, %v53, %v58
    %v63 = vrsqrt.pop %v52
    %v64 = vmul.f32 %v63, %v52
    %v65 = vmul.f32 %v64, %v63
    %v66 = vmul.f32 0.5, %v65
    %v67 = vsub.f32 1.5, %v66
    %v68 = vmul.f32 %v63, %v67
    %vm69 = vweird.f32 %v52
    %vm70 = vweird.f32 %v63
    %vm71 = vmor %vm69, %vm70
    %v72 = vsel %vm71, %v63, %v68
    %v73 = vmul.f32 %v39, %v62
    %v74 = vmul.f32 %v40, %v72
    %v75 = vld [vmem:[%s1] sm:$0x1]
    %v77 = vperm.slane %v75, 0
    %v79 = vmul.f32 %v73, %v77
    %v80 = vmul.f32 %v74, %v77
    %v81 = vld [vmem:[%s2] sm:$0x1]
    %v83 = vperm.slane %v81, 0
    %v85 = vadd.f32 %v79, %v83
    %v86 = vadd.f32 %v80, %v83
    %v87 = vpack.c.bf16 %v85, %v85
    %v88 = vpack.c.bf16 %v86, %v86
    %vm89 = vcmask 519168
    %90 = vst.msk [vmem:[#allocation2] sm:$0xf] %vm89, %v87
    %91 = vst.msk [vmem:[#allocation2 + $0x4] sm:$0xf] %vm89, %v88
  $region21: #{gpt2_forward.21} parent=0 // pred_fallthru
    _
  %v92 = vld [vmem:[%s3] sm:$0xf]
  %v93 = vld [vmem:[%s3 + $0x4] sm:$0xf]
  %v94 = vld [vmem:[%s3 + $0x8] sm:$0xf]
  %v95 = vld [vmem:[%s3 + $0xc] sm:$0xf]
  %v96 = vld [vmem:[%s3 + $0x10] sm:$0xf]
  %v97 = vld [vmem:[%s3 + $0x14] sm:$0xf]
  %v98 = vld [vmem:[%s3 + $0x18] sm:$0xf]
  %v99 = vld [vmem:[%s3 + $0x1c] sm:$0xf]
  %v100 = vld [vmem:[%s3 + $0x20] sm:$0xf]
  %v101 = vld [vmem:[%s3 + $0x24] sm:$0xf]
  %v102 = vld [vmem:[%s3 + $0x28] sm:$0xf]
  %v103 = vld [vmem:[%s3 + $0x2c] sm:$0xf]
  %v104 = vld [vmem:[%s3 + $0x30] sm:$0xf]
  %v105 = vld [vmem:[%s3 + $0x34] sm:$0xf]
  %v106 = vld [vmem:[%s3 + $0x38] sm:$0xf]
  %v107 = vld [vmem:[%s3 + $0x3c] sm:$0xf]
  %v108 = vld [vmem:[%s3 + $0x40] sm:$0xf]
  %v109 = vld [vmem:[%s3 + $0x44] sm:$0xf]
  %v110 = vld [vmem:[%s3 + $0x48] sm:$0xf]
  %v111 = vld [vmem:[%s3 + $0x4c] sm:$0xf]
  %v112 = vld [vmem:[%s3 + $0x50] sm:$0xf]
  %v113 = vld [vmem:[%s3 + $0x54] sm:$0xf]
  %v114 = vld [vmem:[%s3 + $0x58] sm:$0xf]
  %v115 = vld [vmem:[%s3 + $0x5c] sm:$0xf]
  %v116 = vld [vmem:[%s3 + $0x60] sm:$0xf]
  %v117 = vld [vmem:[%s3 + $0x64] sm:$0xf]
  %v118 = vld [vmem:[%s3 + $0x68] sm:$0xf]
  %v119 = vld [vmem:[%s3 + $0x6c] sm:$0xf]
  %v120 = vld [vmem:[%s3 + $0x70] sm:$0xf]
  %v121 = vld [vmem:[%s3 + $0x74] sm:$0xf]
  %v122 = vld [vmem:[%s3 + $0x78] sm:$0xf]
  %v123 = vld [vmem:[%s3 + $0x7c] sm:$0xf]
  %v124 = vld [vmem:[%s3 + $0x80] sm:$0xf]
  %v125 = vld [vmem:[%s3 + $0x84] sm:$0xf]
  %v126 = vld [vmem:[%s3 + $0x88] sm:$0xf]
  %v127 = vld [vmem:[%s3 + $0x8c] sm:$0xf]
  %v128 = vld [vmem:[%s3 + $0x90] sm:$0xf]
  %v129 = vld [vmem:[%s3 + $0x94] sm:$0xf]
  %v130 = vld [vmem:[%s3 + $0x98] sm:$0xf]
  %v131 = vld [vmem:[%s3 + $0x9c] sm:$0xf]
  %v132 = vld [vmem:[%s3 + $0xa0] sm:$0xf]
  %v133 = vld [vmem:[%s3 + $0xa4] sm:$0xf]
  %v134 = vld [vmem:[%s3 + $0xa8] sm:$0xf]
  %v135 = vld [vmem:[%s3 + $0xac] sm:$0xf]
  %v136 = vld [vmem:[%s3 + $0xb0] sm:$0xf]
  %v137 = vld [vmem:[%s3 + $0xb4] sm:$0xf]
  %v138 = vld [vmem:[%s3 + $0xb8] sm:$0xf]
  %v139 = vld [vmem:[%s3 + $0xbc] sm:$0xf]
  %v140 = vld [vmem:[%s3 + $0xc0] sm:$0xf]
  %v141 = vld [vmem:[%s3 + $0xc4] sm:$0xf]
  %v142 = vld [vmem:[%s3 + $0xc8] sm:$0xf]
  %v143 = vld [vmem:[%s3 + $0xcc] sm:$0xf]
  %v144 = vld [vmem:[%s3 + $0xd0] sm:$0xf]
  %v145 = vld [vmem:[%s3 + $0xd4] sm:$0xf]
  %v146 = vld [vmem:[%s3 + $0xd8] sm:$0xf]
  %v147 = vld [vmem:[%s3 + $0xdc] sm:$0xf]
  %v148 = vld [vmem:[%s3 + $0xe0] sm:$0xf]
  %v149 = vld [vmem:[%s3 + $0xe4] sm:$0xf]
  %v150 = vld [vmem:[%s3 + $0xe8] sm:$0xf]
  %v151 = vld [vmem:[%s3 + $0xec] sm:$0xf]
  %v152 = vld [vmem:[%s3 + $0xf0] sm:$0xf]
  %v153 = vld [vmem:[%s3 + $0xf4] sm:$0xf]
  %v154 = vld [vmem:[%s3 + $0xf8] sm:$0xf]
  %v155 = vld [vmem:[%s3 + $0xfc] sm:$0xf]
  %v156 = vld [vmem:[#allocation2] sm:$0xf]
  %v157 = vld [vmem:[#allocation2 + $0x4] sm:$0xf]
  %v160 = vunpack.c.l.b16 %v156
  %v161 = vunpack.c.l.b16 %v157
  %v162 = vpack.c.b16 %v161, %v160
  %v227 = vunpack.c.l.b16 %v92
  %v228 = vunpack.c.l.b16 %v93
  %v229 = vunpack.c.l.b16 %v94
  %v230 = vunpack.c.l.b16 %v95
  %v231 = vunpack.c.l.b16 %v96
  %v232 = vunpack.c.l.b16 %v97
  %v233 = vunpack.c.l.b16 %v98
  %v234 = vunpack.c.l.b16 %v99
  %v235 = vunpack.c.l.b16 %v100
  %v236 = vunpack.c.l.b16 %v101
  %v237 = vunpack.c.l.b16 %v102
  %v238 = vunpack.c.l.b16 %v103
  %v239 = vunpack.c.l.b16 %v104
  %v240 = vunpack.c.l.b16 %v105
  %v241 = vunpack.c.l.b16 %v106
  %v242 = vunpack.c.l.b16 %v107
  %v243 = vunpack.c.l.b16 %v108
  %v244 = vunpack.c.l.b16 %v109
  %v245 = vunpack.c.l.b16 %v110
  %v246 = vunpack.c.l.b16 %v111
  %v247 = vunpack.c.l.b16 %v112
  %v248 = vunpack.c.l.b16 %v113
  %v249 = vunpack.c.l.b16 %v114
  %v250 = vunpack.c.l.b16 %v115
  %v251 = vunpack.c.l.b16 %v116
  %v252 = vunpack.c.l.b16 %v117
  %v253 = vunpack.c.l.b16 %v118
  %v254 = vunpack.c.l.b16 %v119
  %v255 = vunpack.c.l.b16 %v120
  %v256 = vunpack.c.l.b16 %v121
  %v257 = vunpack.c.l.b16 %v122
  %v258 = vunpack.c.l.b16 %v123
  %v259 = vunpack.c.l.b16 %v124
  %v260 = vunpack.c.l.b16 %v125
  %v261 = vunpack.c.l.b16 %v126
  %v262 = vunpack.c.l.b16 %v127
  %v263 = vunpack.c.l.b16 %v128
  %v264 = vunpack.c.l.b16 %v129
  %v265 = vunpack.c.l.b16 %v130
  %v266 = vunpack.c.l.b16 %v131
  %v267 = vunpack.c.l.b16 %v132
  %v268 = vunpack.c.l.b16 %v133
  %v269 = vunpack.c.l.b16 %v134
  %v270 = vunpack.c.l.b16 %v135
  %v271 = vunpack.c.l.b16 %v136
  %v272 = vunpack.c.l.b16 %v137
  %v273 = vunpack.c.l.b16 %v138
  %v274 = vunpack.c.l.b16 %v139
  %v275 = vunpack.c.l.b16 %v140
  %v276 = vunpack.c.l.b16 %v141
  %v277 = vunpack.c.l.b16 %v142
  %v278 = vunpack.c.l.b16 %v143
  %v279 = vunpack.c.l.b16 %v144
  %v280 = vunpack.c.l.b16 %v145
  %v281 = vunpack.c.l.b16 %v146
  %v282 = vunpack.c.l.b16 %v147
  %v283 = vunpack.c.l.b16 %v148
  %v284 = vunpack.c.l.b16 %v149
  %v285 = vunpack.c.l.b16 %v150
  %v286 = vunpack.c.l.b16 %v151
  %v287 = vunpack.c.l.b16 %v152
  %v288 = vunpack.c.l.b16 %v153
  %v289 = vunpack.c.l.b16 %v154
  %v290 = vunpack.c.l.b16 %v155
  %v291 = vpack.c.b16 %v228, %v227
  %v292 = vpack.c.b16 %v230, %v229
  %v293 = vpack.c.b16 %v232, %v231
  %v294 = vpack.c.b16 %v234, %v233
  %v295 = vpack.c.b16 %v236, %v235
  %v296 = vpack.c.b16 %v238, %v237
  %v297 = vpack.c.b16 %v240, %v239
  %v298 = vpack.c.b16 %v242, %v241
  %v299 = vpack.c.b16 %v244, %v243
  %v300 = vpack.c.b16 %v246, %v245
  %v301 = vpack.c.b16 %v248, %v247
  %v302 = vpack.c.b16 %v250, %v249
  %v303 = vpack.c.b16 %v252, %v251
  %v304 = vpack.c.b16 %v254, %v253
  %v305 = vpack.c.b16 %v256, %v255
  %v306 = vpack.c.b16 %v258, %v257
  %v307 = vpack.c.b16 %v260, %v259
  %v308 = vpack.c.b16 %v262, %v261
  %v309 = vpack.c.b16 %v264, %v263
  %v310 = vpack.c.b16 %v266, %v265
  %v311 = vpack.c.b16 %v268, %v267
  %v312 = vpack.c.b16 %v270, %v269
  %v313 = vpack.c.b16 %v272, %v271
  %v314 = vpack.c.b16 %v274, %v273
  %v315 = vpack.c.b16 %v276, %v275
  %v316 = vpack.c.b16 %v278, %v277
  %v317 = vpack.c.b16 %v280, %v279
  %v318 = vpack.c.b16 %v282, %v281
  %v319 = vpack.c.b16 %v284, %v283
  %v320 = vpack.c.b16 %v286, %v285
  %v321 = vpack.c.b16 %v288, %v287
  %v322 = vpack.c.b16 %v290, %v289
  %vm323 = vcmask 523264
  %v325 = vsel %vm323, %v162, 0
  %v328 = vsel %vm323, %v291, 0
  %v331 = vsel %vm323, %v292, 0
  %v334 = vsel %vm323, %v293, 0
  %v337 = vsel %vm323, %v294, 0
  %v340 = vsel %vm323, %v295, 0
  %v343 = vsel %vm323, %v296, 0
  %v346 = vsel %vm323, %v297, 0
  %v349 = vsel %vm323, %v298, 0
  %v352 = vsel %vm323, %v299, 0
  %v355 = vsel %vm323, %v300, 0
  %v358 = vsel %vm323, %v301, 0
  %v361 = vsel %vm323, %v302, 0
  %v364 = vsel %vm323, %v303, 0
  %v367 = vsel %vm323, %v304, 0
  %v370 = vsel %vm323, %v305, 0
  %v373 = vsel %vm323, %v306, 0
  %v376 = vsel %vm323, %v307, 0
  %v379 = vsel %vm323, %v308, 0
  %v382 = vsel %vm323, %v309, 0
  %v385 = vsel %vm323, %v310, 0
  %v388 = vsel %vm323, %v311, 0
  %v391 = vsel %vm323, %v312, 0
  %v394 = vsel %vm323, %v313, 0
  %v397 = vsel %vm323, %v314, 0
  %v400 = vsel %vm323, %v315, 0
  %v403 = vsel %vm323, %v316, 0
  %v406 = vsel %vm323, %v317, 0
  %v409 = vsel %vm323, %v318, 0
  %v412 = vsel %vm323, %v319, 0
  %v415 = vsel %vm323, %v320, 0
  %v418 = vsel %vm323, %v321, 0
  %v421 = vsel %vm323, %v322, 0
  %423 = vmatpush.bf16.xpose.msra.mxu0 %v349
  %424 = vmatpush.bf16.xpose.msra.mxu0 %v346
  %425 = vmatpush.bf16.xpose.msra.mxu0 %v343
  %426 = vmatpush.bf16.xpose.msra.mxu0 %v340
  %427 = vmatpush.bf16.xpose.msra.mxu0 %v337
  %428 = vmatpush.bf16.xpose.msra.mxu0 %v334
  %429 = vmatpush.bf16.xpose.msra.mxu0 %v331
  %430 = vmatpush.bf16.xpose.msra.mxu0 %v328
  %431 = vmatmul.bf16.gmra.mxu0 %v325
  %v432 = vpop.f32.mrf.mxu0
  %v433 = vadd.f32 0.0, %v432
  %v434 = vpop.f32.mrf.mxu0
  %v435 = vadd.f32 0.0, %v434
  %436 = vdwg.mxu0
  %437 = vmatpush.bf16.xpose.msra.mxu0 %v373
  %438 = vmatpush.bf16.xpose.msra.mxu0 %v370
  %439 = vmatpush.bf16.xpose.msra.mxu0 %v367
  %440 = vmatpush.bf16.xpose.msra.mxu0 %v364
  %441 = vmatpush.bf16.xpose.msra.mxu0 %v361
  %442 = vmatpush.bf16.xpose.msra.mxu0 %v358
  %443 = vmatpush.bf16.xpose.msra.mxu0 %v355
  %444 = vmatpush.bf16.xpose.msra.mxu0 %v352
  %445 = vmatmul.bf16.gmra.mxu0 %v325
  %v446 = vpop.f32.mrf.mxu0
  %v447 = vadd.f32 0.0, %v446
  %v448 = vpop.f32.mrf.mxu0
  %v449 = vadd.f32 0.0, %v448
  %450 = vdwg.mxu0
  %451 = vmatpush.bf16.xpose.msra.mxu0 %v397
  %452 = vmatpush.bf16.xpose.msra.mxu0 %v394
  %453 = vmatpush.bf16.xpose.msra.mxu0 %v391
  %454 = vmatpush.bf16.xpose.msra.mxu0 %v388
  %455 = vmatpush.bf16.xpose.msra.mxu0 %v385
  %456 = vmatpush.bf16.xpose.msra.mxu0 %v382
  %457 = vmatpush.bf16.xpose.msra.mxu0 %v379
  %458 = vmatpush.bf16.xpose.msra.mxu0 %v376
  %459 = vmatmul.bf16.gmra.mxu0 %v325
  %v460 = vpop.f32.mrf.mxu0
  %v461 = vadd.f32 0.0, %v460
  %v462 = vpop.f32.mrf.mxu0
  %v463 = vadd.f32 0.0, %v462
  %464 = vdwg.mxu0
  %465 = vmatpush.bf16.xpose.msra.mxu0 %v421
  %466 = vmatpush.bf16.xpose.msra.mxu0 %v418
  %467 = vmatpush.bf16.xpose.msra.mxu0 %v415
  %468 = vmatpush.bf16.xpose.msra.mxu0 %v412
  %469 = vmatpush.bf16.xpose.msra.mxu0 %v409
  %470 = vmatpush.bf16.xpose.msra.mxu0 %v406
  %471 = vmatpush.bf16.xpose.msra.mxu0 %v403
  %472 = vmatpush.bf16.xpose.msra.mxu0 %v400
  %473 = vmatmul.bf16.gmra.mxu0 %v325
  %v474 = vpop.f32.mrf.mxu0
  %v475 = vadd.f32 0.0, %v474
  %v476 = vpop.f32.mrf.mxu0
  %v477 = vadd.f32 0.0, %v476
  %478 = vdwg.mxu0
  %479 = vst [vmem:[%s4] sm:$0xff] %v433
  %480 = vst [vmem:[%s4 + $0x8] sm:$0xff] %v447
  %481 = vst [vmem:[%s4 + $0x10] sm:$0xff] %v461
  %482 = vst [vmem:[%s4 + $0x18] sm:$0xff] %v475
  %483 = vst [vmem:[%s4 + $0x20] sm:$0xff] %v435
  %484 = vst [vmem:[%s4 + $0x28] sm:$0xff] %v449
  %485 = vst [vmem:[%s4 + $0x30] sm:$0xff] %v463
  %486 = vst [vmem:[%s4 + $0x38] sm:$0xff] %v477
  // Predicated region
  $region22: #{gpt2_forward.21} parent=0 // pred_check
    _
  $region23: #{gpt2_forward.21} parent=0 // pred_check_branch
    %488 = sbr.rel (0) target = $region25
  $region24: #{gpt2_forward.21} parent=0 // pred_region
    _
  $region25: #{gpt2_forward.21} parent=0 // pred_fallthru
    _
  // Predicated region
  $region26: #{gpt2_forward.21} parent=0 // pred_check
    _
  $region27: #{gpt2_forward.21} parent=0 // pred_check_branch
    %490 = sbr.rel (0) target = $region29
  $region28: #{gpt2_forward.21} parent=0 // pred_region
    _
  $region29: #{gpt2_forward.21} parent=0 // pred_fallthru
    _

</llo_original>
